<compile_context>
chip_gen: v7x
topology: tpu7x:2x2x1
jax: 0.10.0
libtpu: 0.0.40
codegen_flags: <defaults>
</compile_context>

<pallas_src>
import functools

import jax
import jax.numpy as jnp
from jax.experimental import pallas as pl
from jax.experimental.pallas import tpu as pltpu

_NEG_BIG = -1e30


def mha_flash_kernel(xq_ref, wq_ref, k_ref, v_ref, wdt_ref, o_ref,
                     q_sc, m_sc, l_sc, acc_sc, att_sc,
                     *, heads_num, head_size, q_tile, kv_tile):
    """Grid = (batch, q_tiles, kv_tiles); kv is the innermost ("arbitrary") axis.

    xq_ref  : (1, TQ, E)  bf16   q-tile rows of x (resident across kv axis)
    wq_ref  : (E, H*hs)   bf16   fused per-head Q weights, scale pre-folded
    k_ref   : (1, TK, H*hs) bf16 precomputed K tile (index clamped to min(ki, qi))
    v_ref   : (1, TK, H*hs) bf16 precomputed V tile (index clamped)
    wdt_ref : (H*hs, H*hs) bf16  dense weight, pre-transposed (att @ wd.T)
    o_ref   : (1, TQ, H*hs)      output tile (resident across the kv axis)
    q_sc    : (TQ, H*hs)  bf16   Q projection, computed once per q tile
    m_sc/l_sc : (H, TQ, 1) f32   online-softmax running max / denominator
    acc_sc    : (H, TQ, hs) f32  per-head weighted-value accumulator
    att_sc    : (TQ, H*hs) bf16  normalized head outputs, lane-fused for dense
    """
    qi = pl.program_id(1)
    ki = pl.program_id(2)
    nk = pl.num_programs(2)

    @pl.when(ki == 0)
    def _init():
        # Q projection once per (b, qi); 1/sqrt(hs) already folded into wq.
        q_sc[...] = jnp.dot(xq_ref[0], wq_ref[...],
                            preferred_element_type=jnp.float32).astype(jnp.bfloat16)
        m_sc[...] = jnp.full_like(m_sc, _NEG_BIG)
        l_sc[...] = jnp.zeros_like(l_sc)
        acc_sc[...] = jnp.zeros_like(acc_sc)

    def _attend(masked):
        k_all = k_ref[0]                                            # (TK, H*hs) bf16
        v_all = v_ref[0]                                            # (TK, H*hs) bf16
        if masked:
            # Diagonal tile only (q_start == k_start since q_tile == kv_tile):
            # finite negative additive bias -> no inf-inf NaN hazard.
            row = jax.lax.broadcasted_iota(jnp.int32, (q_tile, kv_tile), 0)
            col = jax.lax.broadcasted_iota(jnp.int32, (q_tile, kv_tile), 1)
            bias = jnp.where(row >= col, 0.0, _NEG_BIG).astype(jnp.float32)
        for h in range(heads_num):                                  # small static H
            lo = h * head_size
            hi = lo + head_size
            q = q_sc[:, lo:hi]                                      # (TQ, hs) bf16
            k = k_all[:, lo:hi]                                     # (TK, hs) bf16
            v = v_all[:, lo:hi]                                     # (TK, hs) bf16

            s = jax.lax.dot_general(q, k, (((1,), (1,)), ((), ())),
                                    preferred_element_type=jnp.float32)  # (TQ, TK) f32
            if masked:
                s = s + bias

            m_prev = m_sc[h]                                        # (TQ, 1) f32
            m_new = jnp.maximum(m_prev, jnp.max(s, axis=-1, keepdims=True))
            alpha = jnp.exp(m_prev - m_new)
            p = jnp.exp(s - m_new)                                  # (TQ, TK) f32
            l_sc[h] = alpha * l_sc[h] + jnp.sum(p, axis=-1, keepdims=True)
            acc_sc[h] = alpha * acc_sc[h] + jnp.dot(
                p.astype(jnp.bfloat16), v, preferred_element_type=jnp.float32)
            m_sc[h] = m_new

    # Strictly below the diagonal: no mask built / added at all.
    @pl.when(ki < qi)
    def _below_diag():
        _attend(masked=False)

    # Diagonal tile: causal mask needed.  Tiles with ki > qi are skipped
    # entirely (and their DMA was clamped to the diagonal block, so no new copy).
    @pl.when(ki == qi)
    def _on_diag():
        _attend(masked=True)

    @pl.when(ki == nk - 1)
    def _finalize():
        # Normalize each head and place it at its column offset, then ONE
        # lane-dense matmul against the un-split wd.T.
        for h in range(heads_num):
            lo = h * head_size
            inv_l = pl.reciprocal(l_sc[h], approx=True)             # EUP slot
            att_sc[:, lo:lo + head_size] = (acc_sc[h] * inv_l).astype(jnp.bfloat16)
        o_ref[0] = jnp.dot(att_sc[...], wdt_ref[...],
                           preferred_element_type=jnp.float32).astype(o_ref.dtype)


def _pick_tile(seq_len):
    """128 tiles on v5e (4x128 MXU), 256 on v6e/v7x when T allows."""
    try:
        kind = jax.devices()[0].device_kind.lower()
    except Exception:  # pragma: no cover - defensive
        kind = ""
    cap = 256 if ("v6" in kind or "v7" in kind) else 128
    tile = min(seq_len, cap)
    while tile > 8 and seq_len % tile != 0:
        tile //= 2
    return tile


def multi_head_attention(x, wq, wk, wv, wd, *, heads_num, head_size):
    """x: (B, T, E); wq/wk/wv: (H, E, hs) in x @ W form; wd: (head_dim, head_dim)
    in the PyTorch (out_features, in_features) convention."""
    B, T, E = x.shape
    head_dim = heads_num * head_size
    scale = 1.0 / (head_size ** 0.5)

    q_tile = kv_tile = _pick_tile(T)
    assert T % q_tile == 0
    nq, nk = T // q_tile, T // kv_tile

    # Host-side, one-time layout/precision plumbing:
    #  - fuse heads into lane-dense weights, fold the softmax scale into Wq,
    #  - pre-transpose the dense weight, cast everything to bf16.
    w_q = (jnp.transpose(wq, (1, 0, 2)).reshape(E, head_dim) * scale).astype(jnp.bfloat16)
    w_k = jnp.transpose(wk, (1, 0, 2)).reshape(E, head_dim).astype(jnp.bfloat16)
    w_v = jnp.transpose(wv, (1, 0, 2)).reshape(E, head_dim).astype(jnp.bfloat16)
    wd_t = wd.T.astype(jnp.bfloat16)                                  # (hd, hd)

    x_bf = x.astype(jnp.bfloat16)
    # K/V projections hoisted out of the kernel: one XLA GEMM each.
    k = jnp.dot(x_bf, w_k, preferred_element_type=jnp.float32).astype(jnp.bfloat16)
    v = jnp.dot(x_bf, w_v, preferred_element_type=jnp.float32).astype(jnp.bfloat16)

    kernel = functools.partial(
        mha_flash_kernel, heads_num=heads_num, head_size=head_size,
        q_tile=q_tile, kv_tile=kv_tile)

    # Causal DMA clamp: skipped tiles (ki > qi) re-reference block qi -> no DMA.
    kv_map = lambda b, qi, ki: (b, jnp.minimum(ki, qi), 0)

    return pl.pallas_call(
        kernel,
        out_shape=jax.ShapeDtypeStruct((B, T, head_dim), x.dtype),
        grid_spec=pltpu.PrefetchScalarGridSpec(
            num_scalar_prefetch=0,
            grid=(B, nq, nk),
            in_specs=[
                pl.BlockSpec((1, q_tile, E), lambda b, qi, ki: (b, qi, 0)),
                pl.BlockSpec((E, head_dim), lambda b, qi, ki: (0, 0)),
                pl.BlockSpec((1, kv_tile, head_dim), kv_map),
                pl.BlockSpec((1, kv_tile, head_dim), kv_map),
                pl.BlockSpec((head_dim, head_dim), lambda b, qi, ki: (0, 0)),
            ],
            out_specs=pl.BlockSpec((1, q_tile, head_dim),
                                   lambda b, qi, ki: (b, qi, 0)),
            scratch_shapes=[
                pltpu.VMEM((q_tile, head_dim), jnp.bfloat16),             # q
                pltpu.VMEM((heads_num, q_tile, 1), jnp.float32),          # m
                pltpu.VMEM((heads_num, q_tile, 1), jnp.float32),          # l
                pltpu.VMEM((heads_num, q_tile, head_size), jnp.float32),  # acc
                pltpu.VMEM((q_tile, head_dim), jnp.bfloat16),             # att
            ],
        ),
        compiler_params=pltpu.CompilerParams(
            dimension_semantics=("parallel", "parallel", "arbitrary"),
            vmem_limit_bytes=32 * 1024 * 1024),
    )(x_bf, w_q, k, v, wd_t)


def multi_head_attention_ref(x, wq, wk, wv, wd, *, heads_num, head_size):
    """Pure-JAX f32 reference matching the PyTorch forward."""
    scale = 1.0 / (head_size ** 0.5)
    T = x.shape[1]
    causal = jnp.tril(jnp.ones((T, T), dtype=bool))
    heads = []
    for h in range(heads_num):
        q = x @ wq[h]
        k = x @ wk[h]
        v = x @ wv[h]
        s = jnp.einsum("btd,bsd->bts", q, k) * scale
        s = jnp.where(causal[None], s, -jnp.inf)
        p = jax.nn.softmax(s, axis=-1)
        heads.append(jnp.einsum("bts,bsd->btd", p, v))
    att = jnp.concatenate(heads, axis=-1)
    return att @ wd.T


if __name__ == "__main__":
    # Module hyperparameters (small, consistent with the constructor).
    heads_num = 4
    embed_dim = 32
    head_dim = 32                      # dense is Linear(head_dim, head_dim)
    block_size = 8                     # sequence length T
    head_size = head_dim // heads_num  # per-head dim

    B, T, E = 2, block_size, embed_dim

    key = jax.random.PRNGKey(0)
    kx, kq, kk, kv, kd = jax.random.split(key, 5)

    x = jax.random.normal(kx, (B, T, E), dtype=jnp.float32)
    # Per-head projection weights, pre-transposed as (H, E, hs) so kernel does x @ W.
    wq = jax.random.normal(kq, (heads_num, E, head_size), dtype=jnp.float32) * 0.1
    wk = jax.random.normal(kk, (heads_num, E, head_size), dtype=jnp.float32) * 0.1
    wv = jax.random.normal(kv, (heads_num, E, head_size), dtype=jnp.float32) * 0.1
    # Dense weight in PyTorch (out_features, in_features) convention.
    wd = jax.random.normal(kd, (head_dim, head_dim), dtype=jnp.float32) * 0.1

    out = multi_head_attention(x, wq, wk, wv, wd,
                               heads_num=heads_num, head_size=head_size)
    out = jax.block_until_ready(out)

    ref = multi_head_attention_ref(x, wq, wk, wv, wd,
                                   heads_num=heads_num, head_size=head_size)
    assert out.shape == (B, T, head_dim)
    # Tolerance accounts for bfloat16 inputs/weights on the MXU + approx
    # reciprocal in the kernel (reference is pure float32).
    assert jnp.allclose(out, ref, atol=3e-2, rtol=3e-2)

    print("KERNEL_OK")
</pallas_src>

<mosaic_0001>
module attributes {stable_mosaic.version = 11 : i64} {
  func.func @mha_flash_kernel(%arg0: i32, %arg1: i32, %arg2: i32, %arg3: memref<1x8x32xbf16, #tpu.memory_space<vmem>>, %arg4: memref<32x32xbf16, #tpu.memory_space<vmem>>, %arg5: memref<1x8x32xbf16, #tpu.memory_space<vmem>>, %arg6: memref<1x8x32xbf16, #tpu.memory_space<vmem>>, %arg7: memref<32x32xbf16, #tpu.memory_space<vmem>>, %arg8: memref<1x8x32xf32, #tpu.memory_space<vmem>>, %arg9: memref<8x32xbf16, #tpu.memory_space<vmem>>, %arg10: memref<4x8x1xf32, #tpu.memory_space<vmem>>, %arg11: memref<4x8x1xf32, #tpu.memory_space<vmem>>, %arg12: memref<4x8x8xf32, #tpu.memory_space<vmem>>, %arg13: memref<8x32xbf16, #tpu.memory_space<vmem>>) attributes {dimension_semantics = [#tpu.dimension_semantics<parallel>, #tpu.dimension_semantics<parallel>, #tpu.dimension_semantics<arbitrary>], iteration_bounds = array<i64: 2, 1, 1>, scalar_prefetch = 0 : i64, scratch_operands = 5 : i64, tpu.core_type = #tpu.core_type<tc>, window_params = [{transform_indices = @transform_0, window_bounds = array<i64: 1, 8, 32>}, {pipeline_mode = #tpu.pipeline_mode<synchronous>, transform_indices = @transform_1, window_bounds = array<i64: 32, 32>}, {transform_indices = @transform_2, window_bounds = array<i64: 1, 8, 32>}, {transform_indices = @transform_3, window_bounds = array<i64: 1, 8, 32>}, {pipeline_mode = #tpu.pipeline_mode<synchronous>, transform_indices = @transform_4, window_bounds = array<i64: 32, 32>}, {transform_indices = @transform_5, window_bounds = array<i64: 1, 8, 32>}]} {
    %c0_i32 = arith.constant 0 : i32
    %0 = arith.cmpi eq, %arg2, %c0_i32 : i32
    %1 = arith.extui %0 : i1 to i32
    %c0_i32_0 = arith.constant 0 : i32
    %2 = arith.cmpi ne, %1, %c0_i32_0 : i32
    scf.if %2 {
      %c0 = arith.constant 0 : index
      %c0_5 = arith.constant 0 : index
      %c0_6 = arith.constant 0 : index
      %12 = vector.load %arg3[%c0, %c0_5, %c0_6] : memref<1x8x32xbf16, #tpu.memory_space<vmem>>, vector<1x8x32xbf16>
      %13 = vector.shape_cast %12 : vector<1x8x32xbf16> to vector<8x32xbf16>
      %c0_7 = arith.constant 0 : index
      %c0_8 = arith.constant 0 : index
      %14 = vector.load %arg4[%c0_7, %c0_8] : memref<32x32xbf16, #tpu.memory_space<vmem>>, vector<32x32xbf16>
      %cst = arith.constant dense<0.000000e+00> : vector<8x32xf32>
      %15 = tpu.matmul %13, %14, %cst {dimension_numbers = #tpu.dot_dimension_numbers<[1], [0], [0], [1], [0, 0, 1, 1], [], []>} : vector<8x32xbf16>, vector<32x32xbf16>, vector<8x32xf32> -> vector<8x32xf32>
      %16 = arith.truncf %15 : vector<8x32xf32> to vector<8x32xbf16>
      %c0_9 = arith.constant 0 : index
      %c0_10 = arith.constant 0 : index
      %17 = vector.load %arg9[%c0_9, %c0_10] : memref<8x32xbf16, #tpu.memory_space<vmem>>, vector<8x32xbf16>
      tpu.vector_store %arg9[%c0_9, %c0_10], %16 {strides = array<i32>} : memref<8x32xbf16, #tpu.memory_space<vmem>>, vector<8x32xbf16>,
      %cst_11 = arith.constant -1.000000e+30 : f32
      %18 = vector.broadcast %cst_11 : f32 to vector<4x8x1xf32>
      %c0_12 = arith.constant 0 : index
      %c0_13 = arith.constant 0 : index
      %c0_14 = arith.constant 0 : index
      %19 = vector.load %arg10[%c0_12, %c0_13, %c0_14] : memref<4x8x1xf32, #tpu.memory_space<vmem>>, vector<4x8x1xf32>
      tpu.vector_store %arg10[%c0_12, %c0_13, %c0_14], %18 {strides = array<i32>} : memref<4x8x1xf32, #tpu.memory_space<vmem>>, vector<4x8x1xf32>,
      %cst_15 = arith.constant 0.000000e+00 : f32
      %20 = vector.broadcast %cst_15 : f32 to vector<4x8x1xf32>
      %c0_16 = arith.constant 0 : index
      %c0_17 = arith.constant 0 : index
      %c0_18 = arith.constant 0 : index
      %21 = vector.load %arg11[%c0_16, %c0_17, %c0_18] : memref<4x8x1xf32, #tpu.memory_space<vmem>>, vector<4x8x1xf32>
      tpu.vector_store %arg11[%c0_16, %c0_17, %c0_18], %20 {strides = array<i32>} : memref<4x8x1xf32, #tpu.memory_space<vmem>>, vector<4x8x1xf32>,
      %cst_19 = arith.constant 0.000000e+00 : f32
      %22 = vector.broadcast %cst_19 : f32 to vector<4x8x8xf32>
      %c0_20 = arith.constant 0 : index
      %c0_21 = arith.constant 0 : index
      %c0_22 = arith.constant 0 : index
      %23 = vector.load %arg12[%c0_20, %c0_21, %c0_22] : memref<4x8x8xf32, #tpu.memory_space<vmem>>, vector<4x8x8xf32>
      tpu.vector_store %arg12[%c0_20, %c0_21, %c0_22], %22 {strides = array<i32>} : memref<4x8x8xf32, #tpu.memory_space<vmem>>, vector<4x8x8xf32>,
    } else {
    }
    %3 = arith.cmpi slt, %arg2, %arg1 : i32
    %4 = arith.extui %3 : i1 to i32
    %c0_i32_1 = arith.constant 0 : i32
    %5 = arith.cmpi ne, %4, %c0_i32_1 : i32
    scf.if %5 {
      %c0 = arith.constant 0 : index
      %c0_5 = arith.constant 0 : index
      %c0_6 = arith.constant 0 : index
      %12 = vector.load %arg5[%c0, %c0_5, %c0_6] : memref<1x8x32xbf16, #tpu.memory_space<vmem>>, vector<1x8x32xbf16>
      %13 = vector.shape_cast %12 : vector<1x8x32xbf16> to vector<8x32xbf16>
      %c0_7 = arith.constant 0 : index
      %c0_8 = arith.constant 0 : index
      %c0_9 = arith.constant 0 : index
      %14 = vector.load %arg6[%c0_7, %c0_8, %c0_9] : memref<1x8x32xbf16, #tpu.memory_space<vmem>>, vector<1x8x32xbf16>
      %15 = vector.shape_cast %14 : vector<1x8x32xbf16> to vector<8x32xbf16>
      %c0_10 = arith.constant 0 : index
      %c0_11 = arith.constant 0 : index
      %16 = vector.load %arg9[%c0_10, %c0_11] : memref<8x32xbf16, #tpu.memory_space<vmem>>, vector<8x8xbf16>
      %17 = vector.extract_strided_slice %13 {offsets = [0, 0], sizes = [8, 8], strides = [1, 1]} : vector<8x32xbf16> to vector<8x8xbf16>
      %18 = vector.extract_strided_slice %15 {offsets = [0, 0], sizes = [8, 8], strides = [1, 1]} : vector<8x32xbf16> to vector<8x8xbf16>
      %cst = arith.constant dense<0.000000e+00> : vector<8x8xf32>
      %19 = tpu.matmul %16, %17, %cst {dimension_numbers = #tpu.dot_dimension_numbers<[1], [1], [0], [0], [0, 0, 1, 0], [], []>} : vector<8x8xbf16>, vector<8x8xbf16>, vector<8x8xf32> -> vector<8x8xf32>
      %c0_12 = arith.constant 0 : index
      %c0_13 = arith.constant 0 : index
      %c0_14 = arith.constant 0 : index
      %20 = vector.load %arg10[%c0_12, %c0_13, %c0_14] : memref<4x8x1xf32, #tpu.memory_space<vmem>>, vector<1x8x1xf32>
      %21 = vector.shape_cast %20 : vector<1x8x1xf32> to vector<8x1xf32>
      %cst_15 = arith.constant dense<0xFF800000> : vector<8xf32>
      %22 = vector.multi_reduction <maximumf>, %19, %cst_15 [1] : vector<8x8xf32> to vector<8xf32>
      %23 = vector.shape_cast %22 : vector<8xf32> to vector<8x1xf32>
      %24 = arith.maximumf %21, %23 : vector<8x1xf32>
      %25 = arith.subf %21, %24 : vector<8x1xf32>
      %26 = math.exp %25 : vector<8x1xf32>
      %27 = vector.broadcast %24 : vector<8x1xf32> to vector<8x8xf32>
      %28 = arith.subf %19, %27 : vector<8x8xf32>
      %29 = math.exp %28 : vector<8x8xf32>
      %c0_16 = arith.constant 0 : index
      %c0_17 = arith.constant 0 : index
      %c0_18 = arith.constant 0 : index
      %30 = vector.load %arg11[%c0_16, %c0_17, %c0_18] : memref<4x8x1xf32, #tpu.memory_space<vmem>>, vector<1x8x1xf32>
      %31 = vector.shape_cast %30 : vector<1x8x1xf32> to vector<8x1xf32>
      %32 = arith.mulf %26, %31 : vector<8x1xf32>
      %cst_19 = arith.constant dense<0.000000e+00> : vector<8xf32>
      %33 = vector.multi_reduction <add>, %29, %cst_19 [1] : vector<8x8xf32> to vector<8xf32>
      %34 = vector.shape_cast %33 : vector<8xf32> to vector<8x1xf32>
      %35 = arith.addf %32, %34 : vector<8x1xf32>
      %c0_20 = arith.constant 0 : index
      %c0_21 = arith.constant 0 : index
      %c0_22 = arith.constant 0 : index
      %36 = vector.load %arg11[%c0_20, %c0_21, %c0_22] : memref<4x8x1xf32, #tpu.memory_space<vmem>>, vector<1x8x1xf32>
      %37 = vector.shape_cast %36 : vector<1x8x1xf32> to vector<8x1xf32>
      %38 = vector.shape_cast %35 : vector<8x1xf32> to vector<1x8x1xf32>
      tpu.vector_store %arg11[%c0_20, %c0_21, %c0_22], %38 {strides = array<i32>} : memref<4x8x1xf32, #tpu.memory_space<vmem>>, vector<1x8x1xf32>,
      %c0_23 = arith.constant 0 : index
      %c0_24 = arith.constant 0 : index
      %c0_25 = arith.constant 0 : index
      %39 = vector.load %arg12[%c0_23, %c0_24, %c0_25] : memref<4x8x8xf32, #tpu.memory_space<vmem>>, vector<1x8x8xf32>
      %40 = vector.shape_cast %39 : vector<1x8x8xf32> to vector<8x8xf32>
      %41 = vector.broadcast %26 : vector<8x1xf32> to vector<8x8xf32>
      %42 = arith.mulf %41, %40 : vector<8x8xf32>
      %43 = arith.truncf %29 : vector<8x8xf32> to vector<8x8xbf16>
      %cst_26 = arith.constant dense<0.000000e+00> : vector<8x8xf32>
      %44 = tpu.matmul %43, %18, %cst_26 {dimension_numbers = #tpu.dot_dimension_numbers<[1], [0], [0], [1], [0, 0, 1, 1], [], []>} : vector<8x8xbf16>, vector<8x8xbf16>, vector<8x8xf32> -> vector<8x8xf32>
      %45 = arith.addf %42, %44 : vector<8x8xf32>
      %c0_27 = arith.constant 0 : index
      %c0_28 = arith.constant 0 : index
      %c0_29 = arith.constant 0 : index
      %46 = vector.load %arg12[%c0_27, %c0_28, %c0_29] : memref<4x8x8xf32, #tpu.memory_space<vmem>>, vector<1x8x8xf32>
      %47 = vector.shape_cast %46 : vector<1x8x8xf32> to vector<8x8xf32>
      %48 = vector.shape_cast %45 : vector<8x8xf32> to vector<1x8x8xf32>
      tpu.vector_store %arg12[%c0_27, %c0_28, %c0_29], %48 {strides = array<i32>} : memref<4x8x8xf32, #tpu.memory_space<vmem>>, vector<1x8x8xf32>,
      %c0_30 = arith.constant 0 : index
      %c0_31 = arith.constant 0 : index
      %c0_32 = arith.constant 0 : index
      %49 = vector.load %arg10[%c0_30, %c0_31, %c0_32] : memref<4x8x1xf32, #tpu.memory_space<vmem>>, vector<1x8x1xf32>
      %50 = vector.shape_cast %49 : vector<1x8x1xf32> to vector<8x1xf32>
      %51 = vector.shape_cast %24 : vector<8x1xf32> to vector<1x8x1xf32>
      tpu.vector_store %arg10[%c0_30, %c0_31, %c0_32], %51 {strides = array<i32>} : memref<4x8x1xf32, #tpu.memory_space<vmem>>, vector<1x8x1xf32>,
      %c0_33 = arith.constant 0 : index
      %c8 = arith.constant 8 : index
      %52 = vector.load %arg9[%c0_33, %c8] : memref<8x32xbf16, #tpu.memory_space<vmem>>, vector<8x8xbf16>
      %53 = vector.extract_strided_slice %13 {offsets = [0, 8], sizes = [8, 8], strides = [1, 1]} : vector<8x32xbf16> to vector<8x8xbf16>
      %54 = vector.extract_strided_slice %15 {offsets = [0, 8], sizes = [8, 8], strides = [1, 1]} : vector<8x32xbf16> to vector<8x8xbf16>
      %cst_34 = arith.constant dense<0.000000e+00> : vector<8x8xf32>
      %55 = tpu.matmul %52, %53, %cst_34 {dimension_numbers = #tpu.dot_dimension_numbers<[1], [1], [0], [0], [0, 0, 1, 0], [], []>} : vector<8x8xbf16>, vector<8x8xbf16>, vector<8x8xf32> -> vector<8x8xf32>
      %c1 = arith.constant 1 : index
      %c0_35 = arith.constant 0 : index
      %c0_36 = arith.constant 0 : index
      %56 = vector.load %arg10[%c1, %c0_35, %c0_36] : memref<4x8x1xf32, #tpu.memory_space<vmem>>, vector<1x8x1xf32>
      %57 = vector.shape_cast %56 : vector<1x8x1xf32> to vector<8x1xf32>
      %cst_37 = arith.constant dense<0xFF800000> : vector<8xf32>
      %58 = vector.multi_reduction <maximumf>, %55, %cst_37 [1] : vector<8x8xf32> to vector<8xf32>
      %59 = vector.shape_cast %58 : vector<8xf32> to vector<8x1xf32>
      %60 = arith.maximumf %57, %59 : vector<8x1xf32>
      %61 = arith.subf %57, %60 : vector<8x1xf32>
      %62 = math.exp %61 : vector<8x1xf32>
      %63 = vector.broadcast %60 : vector<8x1xf32> to vector<8x8xf32>
      %64 = arith.subf %55, %63 : vector<8x8xf32>
      %65 = math.exp %64 : vector<8x8xf32>
      %c1_38 = arith.constant 1 : index
      %c0_39 = arith.constant 0 : index
      %c0_40 = arith.constant 0 : index
      %66 = vector.load %arg11[%c1_38, %c0_39, %c0_40] : memref<4x8x1xf32, #tpu.memory_space<vmem>>, vector<1x8x1xf32>
      %67 = vector.shape_cast %66 : vector<1x8x1xf32> to vector<8x1xf32>
      %68 = arith.mulf %62, %67 : vector<8x1xf32>
      %cst_41 = arith.constant dense<0.000000e+00> : vector<8xf32>
      %69 = vector.multi_reduction <add>, %65, %cst_41 [1] : vector<8x8xf32> to vector<8xf32>
      %70 = vector.shape_cast %69 : vector<8xf32> to vector<8x1xf32>
      %71 = arith.addf %68, %70 : vector<8x1xf32>
      %c1_42 = arith.constant 1 : index
      %c0_43 = arith.constant 0 : index
      %c0_44 = arith.constant 0 : index
      %72 = vector.load %arg11[%c1_42, %c0_43, %c0_44] : memref<4x8x1xf32, #tpu.memory_space<vmem>>, vector<1x8x1xf32>
      %73 = vector.shape_cast %72 : vector<1x8x1xf32> to vector<8x1xf32>
      %74 = vector.shape_cast %71 : vector<8x1xf32> to vector<1x8x1xf32>
      tpu.vector_store %arg11[%c1_42, %c0_43, %c0_44], %74 {strides = array<i32>} : memref<4x8x1xf32, #tpu.memory_space<vmem>>, vector<1x8x1xf32>,
      %c1_45 = arith.constant 1 : index
      %c0_46 = arith.constant 0 : index
      %c0_47 = arith.constant 0 : index
      %75 = vector.load %arg12[%c1_45, %c0_46, %c0_47] : memref<4x8x8xf32, #tpu.memory_space<vmem>>, vector<1x8x8xf32>
      %76 = vector.shape_cast %75 : vector<1x8x8xf32> to vector<8x8xf32>
      %77 = vector.broadcast %62 : vector<8x1xf32> to vector<8x8xf32>
      %78 = arith.mulf %77, %76 : vector<8x8xf32>
      %79 = arith.truncf %65 : vector<8x8xf32> to vector<8x8xbf16>
      %cst_48 = arith.constant dense<0.000000e+00> : vector<8x8xf32>
      %80 = tpu.matmul %79, %54, %cst_48 {dimension_numbers = #tpu.dot_dimension_numbers<[1], [0], [0], [1], [0, 0, 1, 1], [], []>} : vector<8x8xbf16>, vector<8x8xbf16>, vector<8x8xf32> -> vector<8x8xf32>
      %81 = arith.addf %78, %80 : vector<8x8xf32>
      %c1_49 = arith.constant 1 : index
      %c0_50 = arith.constant 0 : index
      %c0_51 = arith.constant 0 : index
      %82 = vector.load %arg12[%c1_49, %c0_50, %c0_51] : memref<4x8x8xf32, #tpu.memory_space<vmem>>, vector<1x8x8xf32>
      %83 = vector.shape_cast %82 : vector<1x8x8xf32> to vector<8x8xf32>
      %84 = vector.shape_cast %81 : vector<8x8xf32> to vector<1x8x8xf32>
      tpu.vector_store %arg12[%c1_49, %c0_50, %c0_51], %84 {strides = array<i32>} : memref<4x8x8xf32, #tpu.memory_space<vmem>>, vector<1x8x8xf32>,
      %c1_52 = arith.constant 1 : index
      %c0_53 = arith.constant 0 : index
      %c0_54 = arith.constant 0 : index
      %85 = vector.load %arg10[%c1_52, %c0_53, %c0_54] : memref<4x8x1xf32, #tpu.memory_space<vmem>>, vector<1x8x1xf32>
      %86 = vector.shape_cast %85 : vector<1x8x1xf32> to vector<8x1xf32>
      %87 = vector.shape_cast %60 : vector<8x1xf32> to vector<1x8x1xf32>
      tpu.vector_store %arg10[%c1_52, %c0_53, %c0_54], %87 {strides = array<i32>} : memref<4x8x1xf32, #tpu.memory_space<vmem>>, vector<1x8x1xf32>,
      %c0_55 = arith.constant 0 : index
      %c16 = arith.constant 16 : index
      %88 = vector.load %arg9[%c0_55, %c16] : memref<8x32xbf16, #tpu.memory_space<vmem>>, vector<8x8xbf16>
      %89 = vector.extract_strided_slice %13 {offsets = [0, 16], sizes = [8, 8], strides = [1, 1]} : vector<8x32xbf16> to vector<8x8xbf16>
      %90 = vector.extract_strided_slice %15 {offsets = [0, 16], sizes = [8, 8], strides = [1, 1]} : vector<8x32xbf16> to vector<8x8xbf16>
      %cst_56 = arith.constant dense<0.000000e+00> : vector<8x8xf32>
      %91 = tpu.matmul %88, %89, %cst_56 {dimension_numbers = #tpu.dot_dimension_numbers<[1], [1], [0], [0], [0, 0, 1, 0], [], []>} : vector<8x8xbf16>, vector<8x8xbf16>, vector<8x8xf32> -> vector<8x8xf32>
      %c2 = arith.constant 2 : index
      %c0_57 = arith.constant 0 : index
      %c0_58 = arith.constant 0 : index
      %92 = vector.load %arg10[%c2, %c0_57, %c0_58] : memref<4x8x1xf32, #tpu.memory_space<vmem>>, vector<1x8x1xf32>
      %93 = vector.shape_cast %92 : vector<1x8x1xf32> to vector<8x1xf32>
      %cst_59 = arith.constant dense<0xFF800000> : vector<8xf32>
      %94 = vector.multi_reduction <maximumf>, %91, %cst_59 [1] : vector<8x8xf32> to vector<8xf32>
      %95 = vector.shape_cast %94 : vector<8xf32> to vector<8x1xf32>
      %96 = arith.maximumf %93, %95 : vector<8x1xf32>
      %97 = arith.subf %93, %96 : vector<8x1xf32>
      %98 = math.exp %97 : vector<8x1xf32>
      %99 = vector.broadcast %96 : vector<8x1xf32> to vector<8x8xf32>
      %100 = arith.subf %91, %99 : vector<8x8xf32>
      %101 = math.exp %100 : vector<8x8xf32>
      %c2_60 = arith.constant 2 : index
      %c0_61 = arith.constant 0 : index
      %c0_62 = arith.constant 0 : index
      %102 = vector.load %arg11[%c2_60, %c0_61, %c0_62] : memref<4x8x1xf32, #tpu.memory_space<vmem>>, vector<1x8x1xf32>
      %103 = vector.shape_cast %102 : vector<1x8x1xf32> to vector<8x1xf32>
      %104 = arith.mulf %98, %103 : vector<8x1xf32>
      %cst_63 = arith.constant dense<0.000000e+00> : vector<8xf32>
      %105 = vector.multi_reduction <add>, %101, %cst_63 [1] : vector<8x8xf32> to vector<8xf32>
      %106 = vector.shape_cast %105 : vector<8xf32> to vector<8x1xf32>
      %107 = arith.addf %104, %106 : vector<8x1xf32>
      %c2_64 = arith.constant 2 : index
      %c0_65 = arith.constant 0 : index
      %c0_66 = arith.constant 0 : index
      %108 = vector.load %arg11[%c2_64, %c0_65, %c0_66] : memref<4x8x1xf32, #tpu.memory_space<vmem>>, vector<1x8x1xf32>
      %109 = vector.shape_cast %108 : vector<1x8x1xf32> to vector<8x1xf32>
      %110 = vector.shape_cast %107 : vector<8x1xf32> to vector<1x8x1xf32>
      tpu.vector_store %arg11[%c2_64, %c0_65, %c0_66], %110 {strides = array<i32>} : memref<4x8x1xf32, #tpu.memory_space<vmem>>, vector<1x8x1xf32>,
      %c2_67 = arith.constant 2 : index
      %c0_68 = arith.constant 0 : index
      %c0_69 = arith.constant 0 : index
      %111 = vector.load %arg12[%c2_67, %c0_68, %c0_69] : memref<4x8x8xf32, #tpu.memory_space<vmem>>, vector<1x8x8xf32>
      %112 = vector.shape_cast %111 : vector<1x8x8xf32> to vector<8x8xf32>
      %113 = vector.broadcast %98 : vector<8x1xf32> to vector<8x8xf32>
      %114 = arith.mulf %113, %112 : vector<8x8xf32>
      %115 = arith.truncf %101 : vector<8x8xf32> to vector<8x8xbf16>
      %cst_70 = arith.constant dense<0.000000e+00> : vector<8x8xf32>
      %116 = tpu.matmul %115, %90, %cst_70 {dimension_numbers = #tpu.dot_dimension_numbers<[1], [0], [0], [1], [0, 0, 1, 1], [], []>} : vector<8x8xbf16>, vector<8x8xbf16>, vector<8x8xf32> -> vector<8x8xf32>
      %117 = arith.addf %114, %116 : vector<8x8xf32>
      %c2_71 = arith.constant 2 : index
      %c0_72 = arith.constant 0 : index
      %c0_73 = arith.constant 0 : index
      %118 = vector.load %arg12[%c2_71, %c0_72, %c0_73] : memref<4x8x8xf32, #tpu.memory_space<vmem>>, vector<1x8x8xf32>
      %119 = vector.shape_cast %118 : vector<1x8x8xf32> to vector<8x8xf32>
      %120 = vector.shape_cast %117 : vector<8x8xf32> to vector<1x8x8xf32>
      tpu.vector_store %arg12[%c2_71, %c0_72, %c0_73], %120 {strides = array<i32>} : memref<4x8x8xf32, #tpu.memory_space<vmem>>, vector<1x8x8xf32>,
      %c2_74 = arith.constant 2 : index
      %c0_75 = arith.constant 0 : index
      %c0_76 = arith.constant 0 : index
      %121 = vector.load %arg10[%c2_74, %c0_75, %c0_76] : memref<4x8x1xf32, #tpu.memory_space<vmem>>, vector<1x8x1xf32>
      %122 = vector.shape_cast %121 : vector<1x8x1xf32> to vector<8x1xf32>
      %123 = vector.shape_cast %96 : vector<8x1xf32> to vector<1x8x1xf32>
      tpu.vector_store %arg10[%c2_74, %c0_75, %c0_76], %123 {strides = array<i32>} : memref<4x8x1xf32, #tpu.memory_space<vmem>>, vector<1x8x1xf32>,
      %c0_77 = arith.constant 0 : index
      %c24 = arith.constant 24 : index
      %124 = vector.load %arg9[%c0_77, %c24] : memref<8x32xbf16, #tpu.memory_space<vmem>>, vector<8x8xbf16>
      %125 = vector.extract_strided_slice %13 {offsets = [0, 24], sizes = [8, 8], strides = [1, 1]} : vector<8x32xbf16> to vector<8x8xbf16>
      %126 = vector.extract_strided_slice %15 {offsets = [0, 24], sizes = [8, 8], strides = [1, 1]} : vector<8x32xbf16> to vector<8x8xbf16>
      %cst_78 = arith.constant dense<0.000000e+00> : vector<8x8xf32>
      %127 = tpu.matmul %124, %125, %cst_78 {dimension_numbers = #tpu.dot_dimension_numbers<[1], [1], [0], [0], [0, 0, 1, 0], [], []>} : vector<8x8xbf16>, vector<8x8xbf16>, vector<8x8xf32> -> vector<8x8xf32>
      %c3 = arith.constant 3 : index
      %c0_79 = arith.constant 0 : index
      %c0_80 = arith.constant 0 : index
      %128 = vector.load %arg10[%c3, %c0_79, %c0_80] : memref<4x8x1xf32, #tpu.memory_space<vmem>>, vector<1x8x1xf32>
      %129 = vector.shape_cast %128 : vector<1x8x1xf32> to vector<8x1xf32>
      %cst_81 = arith.constant dense<0xFF800000> : vector<8xf32>
      %130 = vector.multi_reduction <maximumf>, %127, %cst_81 [1] : vector<8x8xf32> to vector<8xf32>
      %131 = vector.shape_cast %130 : vector<8xf32> to vector<8x1xf32>
      %132 = arith.maximumf %129, %131 : vector<8x1xf32>
      %133 = arith.subf %129, %132 : vector<8x1xf32>
      %134 = math.exp %133 : vector<8x1xf32>
      %135 = vector.broadcast %132 : vector<8x1xf32> to vector<8x8xf32>
      %136 = arith.subf %127, %135 : vector<8x8xf32>
      %137 = math.exp %136 : vector<8x8xf32>
      %c3_82 = arith.constant 3 : index
      %c0_83 = arith.constant 0 : index
      %c0_84 = arith.constant 0 : index
      %138 = vector.load %arg11[%c3_82, %c0_83, %c0_84] : memref<4x8x1xf32, #tpu.memory_space<vmem>>, vector<1x8x1xf32>
      %139 = vector.shape_cast %138 : vector<1x8x1xf32> to vector<8x1xf32>
      %140 = arith.mulf %134, %139 : vector<8x1xf32>
      %cst_85 = arith.constant dense<0.000000e+00> : vector<8xf32>
      %141 = vector.multi_reduction <add>, %137, %cst_85 [1] : vector<8x8xf32> to vector<8xf32>
      %142 = vector.shape_cast %141 : vector<8xf32> to vector<8x1xf32>
      %143 = arith.addf %140, %142 : vector<8x1xf32>
      %c3_86 = arith.constant 3 : index
      %c0_87 = arith.constant 0 : index
      %c0_88 = arith.constant 0 : index
      %144 = vector.load %arg11[%c3_86, %c0_87, %c0_88] : memref<4x8x1xf32, #tpu.memory_space<vmem>>, vector<1x8x1xf32>
      %145 = vector.shape_cast %144 : vector<1x8x1xf32> to vector<8x1xf32>
      %146 = vector.shape_cast %143 : vector<8x1xf32> to vector<1x8x1xf32>
      tpu.vector_store %arg11[%c3_86, %c0_87, %c0_88], %146 {strides = array<i32>} : memref<4x8x1xf32, #tpu.memory_space<vmem>>, vector<1x8x1xf32>,
      %c3_89 = arith.constant 3 : index
      %c0_90 = arith.constant 0 : index
      %c0_91 = arith.constant 0 : index
      %147 = vector.load %arg12[%c3_89, %c0_90, %c0_91] : memref<4x8x8xf32, #tpu.memory_space<vmem>>, vector<1x8x8xf32>
      %148 = vector.shape_cast %147 : vector<1x8x8xf32> to vector<8x8xf32>
      %149 = vector.broadcast %134 : vector<8x1xf32> to vector<8x8xf32>
      %150 = arith.mulf %149, %148 : vector<8x8xf32>
      %151 = arith.truncf %137 : vector<8x8xf32> to vector<8x8xbf16>
      %cst_92 = arith.constant dense<0.000000e+00> : vector<8x8xf32>
      %152 = tpu.matmul %151, %126, %cst_92 {dimension_numbers = #tpu.dot_dimension_numbers<[1], [0], [0], [1], [0, 0, 1, 1], [], []>} : vector<8x8xbf16>, vector<8x8xbf16>, vector<8x8xf32> -> vector<8x8xf32>
      %153 = arith.addf %150, %152 : vector<8x8xf32>
      %c3_93 = arith.constant 3 : index
      %c0_94 = arith.constant 0 : index
      %c0_95 = arith.constant 0 : index
      %154 = vector.load %arg12[%c3_93, %c0_94, %c0_95] : memref<4x8x8xf32, #tpu.memory_space<vmem>>, vector<1x8x8xf32>
      %155 = vector.shape_cast %154 : vector<1x8x8xf32> to vector<8x8xf32>
      %156 = vector.shape_cast %153 : vector<8x8xf32> to vector<1x8x8xf32>
      tpu.vector_store %arg12[%c3_93, %c0_94, %c0_95], %156 {strides = array<i32>} : memref<4x8x8xf32, #tpu.memory_space<vmem>>, vector<1x8x8xf32>,
      %c3_96 = arith.constant 3 : index
      %c0_97 = arith.constant 0 : index
      %c0_98 = arith.constant 0 : index
      %157 = vector.load %arg10[%c3_96, %c0_97, %c0_98] : memref<4x8x1xf32, #tpu.memory_space<vmem>>, vector<1x8x1xf32>
      %158 = vector.shape_cast %157 : vector<1x8x1xf32> to vector<8x1xf32>
      %159 = vector.shape_cast %132 : vector<8x1xf32> to vector<1x8x1xf32>
      tpu.vector_store %arg10[%c3_96, %c0_97, %c0_98], %159 {strides = array<i32>} : memref<4x8x1xf32, #tpu.memory_space<vmem>>, vector<1x8x1xf32>,
    } else {
    }
    %6 = arith.cmpi eq, %arg2, %arg1 : i32
    %7 = arith.extui %6 : i1 to i32
    %c0_i32_2 = arith.constant 0 : i32
    %8 = arith.cmpi ne, %7, %c0_i32_2 : i32
    scf.if %8 {
      %c0 = arith.constant 0 : index
      %c0_5 = arith.constant 0 : index
      %c0_6 = arith.constant 0 : index
      %12 = vector.load %arg5[%c0, %c0_5, %c0_6] : memref<1x8x32xbf16, #tpu.memory_space<vmem>>, vector<1x8x32xbf16>
      %13 = vector.shape_cast %12 : vector<1x8x32xbf16> to vector<8x32xbf16>
      %c0_7 = arith.constant 0 : index
      %c0_8 = arith.constant 0 : index
      %c0_9 = arith.constant 0 : index
      %14 = vector.load %arg6[%c0_7, %c0_8, %c0_9] : memref<1x8x32xbf16, #tpu.memory_space<vmem>>, vector<1x8x32xbf16>
      %15 = vector.shape_cast %14 : vector<1x8x32xbf16> to vector<8x32xbf16>
      %16 = tpu.iota {dimensions = array<i32: 0>} : vector<8x8xi32>
      %17 = tpu.iota {dimensions = array<i32: 1>} : vector<8x8xi32>
      %18 = arith.cmpi sge, %16, %17 : vector<8x8xi32>
      %cst = arith.constant 0.000000e+00 : f32
      %cst_10 = arith.constant -1.000000e+30 : f32
      %19 = vector.broadcast %cst : f32 to vector<8x8xf32>
      %20 = vector.broadcast %cst_10 : f32 to vector<8x8xf32>
      %21 = arith.select %18, %19, %20 : vector<8x8xi1>, vector<8x8xf32>
      %c0_11 = arith.constant 0 : index
      %c0_12 = arith.constant 0 : index
      %22 = vector.load %arg9[%c0_11, %c0_12] : memref<8x32xbf16, #tpu.memory_space<vmem>>, vector<8x8xbf16>
      %23 = vector.extract_strided_slice %13 {offsets = [0, 0], sizes = [8, 8], strides = [1, 1]} : vector<8x32xbf16> to vector<8x8xbf16>
      %24 = vector.extract_strided_slice %15 {offsets = [0, 0], sizes = [8, 8], strides = [1, 1]} : vector<8x32xbf16> to vector<8x8xbf16>
      %cst_13 = arith.constant dense<0.000000e+00> : vector<8x8xf32>
      %25 = tpu.matmul %22, %23, %cst_13 {dimension_numbers = #tpu.dot_dimension_numbers<[1], [1], [0], [0], [0, 0, 1, 0], [], []>} : vector<8x8xbf16>, vector<8x8xbf16>, vector<8x8xf32> -> vector<8x8xf32>
      %26 = arith.addf %25, %21 : vector<8x8xf32>
      %c0_14 = arith.constant 0 : index
      %c0_15 = arith.constant 0 : index
      %c0_16 = arith.constant 0 : index
      %27 = vector.load %arg10[%c0_14, %c0_15, %c0_16] : memref<4x8x1xf32, #tpu.memory_space<vmem>>, vector<1x8x1xf32>
      %28 = vector.shape_cast %27 : vector<1x8x1xf32> to vector<8x1xf32>
      %cst_17 = arith.constant dense<0xFF800000> : vector<8xf32>
      %29 = vector.multi_reduction <maximumf>, %26, %cst_17 [1] : vector<8x8xf32> to vector<8xf32>
      %30 = vector.shape_cast %29 : vector<8xf32> to vector<8x1xf32>
      %31 = arith.maximumf %28, %30 : vector<8x1xf32>
      %32 = arith.subf %28, %31 : vector<8x1xf32>
      %33 = math.exp %32 : vector<8x1xf32>
      %34 = vector.broadcast %31 : vector<8x1xf32> to vector<8x8xf32>
      %35 = arith.subf %26, %34 : vector<8x8xf32>
      %36 = math.exp %35 : vector<8x8xf32>
      %c0_18 = arith.constant 0 : index
      %c0_19 = arith.constant 0 : index
      %c0_20 = arith.constant 0 : index
      %37 = vector.load %arg11[%c0_18, %c0_19, %c0_20] : memref<4x8x1xf32, #tpu.memory_space<vmem>>, vector<1x8x1xf32>
      %38 = vector.shape_cast %37 : vector<1x8x1xf32> to vector<8x1xf32>
      %39 = arith.mulf %33, %38 : vector<8x1xf32>
      %cst_21 = arith.constant dense<0.000000e+00> : vector<8xf32>
      %40 = vector.multi_reduction <add>, %36, %cst_21 [1] : vector<8x8xf32> to vector<8xf32>
      %41 = vector.shape_cast %40 : vector<8xf32> to vector<8x1xf32>
      %42 = arith.addf %39, %41 : vector<8x1xf32>
      %c0_22 = arith.constant 0 : index
      %c0_23 = arith.constant 0 : index
      %c0_24 = arith.constant 0 : index
      %43 = vector.load %arg11[%c0_22, %c0_23, %c0_24] : memref<4x8x1xf32, #tpu.memory_space<vmem>>, vector<1x8x1xf32>
      %44 = vector.shape_cast %43 : vector<1x8x1xf32> to vector<8x1xf32>
      %45 = vector.shape_cast %42 : vector<8x1xf32> to vector<1x8x1xf32>
      tpu.vector_store %arg11[%c0_22, %c0_23, %c0_24], %45 {strides = array<i32>} : memref<4x8x1xf32, #tpu.memory_space<vmem>>, vector<1x8x1xf32>,
      %c0_25 = arith.constant 0 : index
      %c0_26 = arith.constant 0 : index
      %c0_27 = arith.constant 0 : index
      %46 = vector.load %arg12[%c0_25, %c0_26, %c0_27] : memref<4x8x8xf32, #tpu.memory_space<vmem>>, vector<1x8x8xf32>
      %47 = vector.shape_cast %46 : vector<1x8x8xf32> to vector<8x8xf32>
      %48 = vector.broadcast %33 : vector<8x1xf32> to vector<8x8xf32>
      %49 = arith.mulf %48, %47 : vector<8x8xf32>
      %50 = arith.truncf %36 : vector<8x8xf32> to vector<8x8xbf16>
      %cst_28 = arith.constant dense<0.000000e+00> : vector<8x8xf32>
      %51 = tpu.matmul %50, %24, %cst_28 {dimension_numbers = #tpu.dot_dimension_numbers<[1], [0], [0], [1], [0, 0, 1, 1], [], []>} : vector<8x8xbf16>, vector<8x8xbf16>, vector<8x8xf32> -> vector<8x8xf32>
      %52 = arith.addf %49, %51 : vector<8x8xf32>
      %c0_29 = arith.constant 0 : index
      %c0_30 = arith.constant 0 : index
      %c0_31 = arith.constant 0 : index
      %53 = vector.load %arg12[%c0_29, %c0_30, %c0_31] : memref<4x8x8xf32, #tpu.memory_space<vmem>>, vector<1x8x8xf32>
      %54 = vector.shape_cast %53 : vector<1x8x8xf32> to vector<8x8xf32>
      %55 = vector.shape_cast %52 : vector<8x8xf32> to vector<1x8x8xf32>
      tpu.vector_store %arg12[%c0_29, %c0_30, %c0_31], %55 {strides = array<i32>} : memref<4x8x8xf32, #tpu.memory_space<vmem>>, vector<1x8x8xf32>,
      %c0_32 = arith.constant 0 : index
      %c0_33 = arith.constant 0 : index
      %c0_34 = arith.constant 0 : index
      %56 = vector.load %arg10[%c0_32, %c0_33, %c0_34] : memref<4x8x1xf32, #tpu.memory_space<vmem>>, vector<1x8x1xf32>
      %57 = vector.shape_cast %56 : vector<1x8x1xf32> to vector<8x1xf32>
      %58 = vector.shape_cast %31 : vector<8x1xf32> to vector<1x8x1xf32>
      tpu.vector_store %arg10[%c0_32, %c0_33, %c0_34], %58 {strides = array<i32>} : memref<4x8x1xf32, #tpu.memory_space<vmem>>, vector<1x8x1xf32>,
      %c0_35 = arith.constant 0 : index
      %c8 = arith.constant 8 : index
      %59 = vector.load %arg9[%c0_35, %c8] : memref<8x32xbf16, #tpu.memory_space<vmem>>, vector<8x8xbf16>
      %60 = vector.extract_strided_slice %13 {offsets = [0, 8], sizes = [8, 8], strides = [1, 1]} : vector<8x32xbf16> to vector<8x8xbf16>
      %61 = vector.extract_strided_slice %15 {offsets = [0, 8], sizes = [8, 8], strides = [1, 1]} : vector<8x32xbf16> to vector<8x8xbf16>
      %cst_36 = arith.constant dense<0.000000e+00> : vector<8x8xf32>
      %62 = tpu.matmul %59, %60, %cst_36 {dimension_numbers = #tpu.dot_dimension_numbers<[1], [1], [0], [0], [0, 0, 1, 0], [], []>} : vector<8x8xbf16>, vector<8x8xbf16>, vector<8x8xf32> -> vector<8x8xf32>
      %63 = arith.addf %62, %21 : vector<8x8xf32>
      %c1 = arith.constant 1 : index
      %c0_37 = arith.constant 0 : index
      %c0_38 = arith.constant 0 : index
      %64 = vector.load %arg10[%c1, %c0_37, %c0_38] : memref<4x8x1xf32, #tpu.memory_space<vmem>>, vector<1x8x1xf32>
      %65 = vector.shape_cast %64 : vector<1x8x1xf32> to vector<8x1xf32>
      %cst_39 = arith.constant dense<0xFF800000> : vector<8xf32>
      %66 = vector.multi_reduction <maximumf>, %63, %cst_39 [1] : vector<8x8xf32> to vector<8xf32>
      %67 = vector.shape_cast %66 : vector<8xf32> to vector<8x1xf32>
      %68 = arith.maximumf %65, %67 : vector<8x1xf32>
      %69 = arith.subf %65, %68 : vector<8x1xf32>
      %70 = math.exp %69 : vector<8x1xf32>
      %71 = vector.broadcast %68 : vector<8x1xf32> to vector<8x8xf32>
      %72 = arith.subf %63, %71 : vector<8x8xf32>
      %73 = math.exp %72 : vector<8x8xf32>
      %c1_40 = arith.constant 1 : index
      %c0_41 = arith.constant 0 : index
      %c0_42 = arith.constant 0 : index
      %74 = vector.load %arg11[%c1_40, %c0_41, %c0_42] : memref<4x8x1xf32, #tpu.memory_space<vmem>>, vector<1x8x1xf32>
      %75 = vector.shape_cast %74 : vector<1x8x1xf32> to vector<8x1xf32>
      %76 = arith.mulf %70, %75 : vector<8x1xf32>
      %cst_43 = arith.constant dense<0.000000e+00> : vector<8xf32>
      %77 = vector.multi_reduction <add>, %73, %cst_43 [1] : vector<8x8xf32> to vector<8xf32>
      %78 = vector.shape_cast %77 : vector<8xf32> to vector<8x1xf32>
      %79 = arith.addf %76, %78 : vector<8x1xf32>
      %c1_44 = arith.constant 1 : index
      %c0_45 = arith.constant 0 : index
      %c0_46 = arith.constant 0 : index
      %80 = vector.load %arg11[%c1_44, %c0_45, %c0_46] : memref<4x8x1xf32, #tpu.memory_space<vmem>>, vector<1x8x1xf32>
      %81 = vector.shape_cast %80 : vector<1x8x1xf32> to vector<8x1xf32>
      %82 = vector.shape_cast %79 : vector<8x1xf32> to vector<1x8x1xf32>
      tpu.vector_store %arg11[%c1_44, %c0_45, %c0_46], %82 {strides = array<i32>} : memref<4x8x1xf32, #tpu.memory_space<vmem>>, vector<1x8x1xf32>,
      %c1_47 = arith.constant 1 : index
      %c0_48 = arith.constant 0 : index
      %c0_49 = arith.constant 0 : index
      %83 = vector.load %arg12[%c1_47, %c0_48, %c0_49] : memref<4x8x8xf32, #tpu.memory_space<vmem>>, vector<1x8x8xf32>
      %84 = vector.shape_cast %83 : vector<1x8x8xf32> to vector<8x8xf32>
      %85 = vector.broadcast %70 : vector<8x1xf32> to vector<8x8xf32>
      %86 = arith.mulf %85, %84 : vector<8x8xf32>
      %87 = arith.truncf %73 : vector<8x8xf32> to vector<8x8xbf16>
      %cst_50 = arith.constant dense<0.000000e+00> : vector<8x8xf32>
      %88 = tpu.matmul %87, %61, %cst_50 {dimension_numbers = #tpu.dot_dimension_numbers<[1], [0], [0], [1], [0, 0, 1, 1], [], []>} : vector<8x8xbf16>, vector<8x8xbf16>, vector<8x8xf32> -> vector<8x8xf32>
      %89 = arith.addf %86, %88 : vector<8x8xf32>
      %c1_51 = arith.constant 1 : index
      %c0_52 = arith.constant 0 : index
      %c0_53 = arith.constant 0 : index
      %90 = vector.load %arg12[%c1_51, %c0_52, %c0_53] : memref<4x8x8xf32, #tpu.memory_space<vmem>>, vector<1x8x8xf32>
      %91 = vector.shape_cast %90 : vector<1x8x8xf32> to vector<8x8xf32>
      %92 = vector.shape_cast %89 : vector<8x8xf32> to vector<1x8x8xf32>
      tpu.vector_store %arg12[%c1_51, %c0_52, %c0_53], %92 {strides = array<i32>} : memref<4x8x8xf32, #tpu.memory_space<vmem>>, vector<1x8x8xf32>,
      %c1_54 = arith.constant 1 : index
      %c0_55 = arith.constant 0 : index
      %c0_56 = arith.constant 0 : index
      %93 = vector.load %arg10[%c1_54, %c0_55, %c0_56] : memref<4x8x1xf32, #tpu.memory_space<vmem>>, vector<1x8x1xf32>
      %94 = vector.shape_cast %93 : vector<1x8x1xf32> to vector<8x1xf32>
      %95 = vector.shape_cast %68 : vector<8x1xf32> to vector<1x8x1xf32>
      tpu.vector_store %arg10[%c1_54, %c0_55, %c0_56], %95 {strides = array<i32>} : memref<4x8x1xf32, #tpu.memory_space<vmem>>, vector<1x8x1xf32>,
      %c0_57 = arith.constant 0 : index
      %c16 = arith.constant 16 : index
      %96 = vector.load %arg9[%c0_57, %c16] : memref<8x32xbf16, #tpu.memory_space<vmem>>, vector<8x8xbf16>
      %97 = vector.extract_strided_slice %13 {offsets = [0, 16], sizes = [8, 8], strides = [1, 1]} : vector<8x32xbf16> to vector<8x8xbf16>
      %98 = vector.extract_strided_slice %15 {offsets = [0, 16], sizes = [8, 8], strides = [1, 1]} : vector<8x32xbf16> to vector<8x8xbf16>
      %cst_58 = arith.constant dense<0.000000e+00> : vector<8x8xf32>
      %99 = tpu.matmul %96, %97, %cst_58 {dimension_numbers = #tpu.dot_dimension_numbers<[1], [1], [0], [0], [0, 0, 1, 0], [], []>} : vector<8x8xbf16>, vector<8x8xbf16>, vector<8x8xf32> -> vector<8x8xf32>
      %100 = arith.addf %99, %21 : vector<8x8xf32>
      %c2 = arith.constant 2 : index
      %c0_59 = arith.constant 0 : index
      %c0_60 = arith.constant 0 : index
      %101 = vector.load %arg10[%c2, %c0_59, %c0_60] : memref<4x8x1xf32, #tpu.memory_space<vmem>>, vector<1x8x1xf32>
      %102 = vector.shape_cast %101 : vector<1x8x1xf32> to vector<8x1xf32>
      %cst_61 = arith.constant dense<0xFF800000> : vector<8xf32>
      %103 = vector.multi_reduction <maximumf>, %100, %cst_61 [1] : vector<8x8xf32> to vector<8xf32>
      %104 = vector.shape_cast %103 : vector<8xf32> to vector<8x1xf32>
      %105 = arith.maximumf %102, %104 : vector<8x1xf32>
      %106 = arith.subf %102, %105 : vector<8x1xf32>
      %107 = math.exp %106 : vector<8x1xf32>
      %108 = vector.broadcast %105 : vector<8x1xf32> to vector<8x8xf32>
      %109 = arith.subf %100, %108 : vector<8x8xf32>
      %110 = math.exp %109 : vector<8x8xf32>
      %c2_62 = arith.constant 2 : index
      %c0_63 = arith.constant 0 : index
      %c0_64 = arith.constant 0 : index
      %111 = vector.load %arg11[%c2_62, %c0_63, %c0_64] : memref<4x8x1xf32, #tpu.memory_space<vmem>>, vector<1x8x1xf32>
      %112 = vector.shape_cast %111 : vector<1x8x1xf32> to vector<8x1xf32>
      %113 = arith.mulf %107, %112 : vector<8x1xf32>
      %cst_65 = arith.constant dense<0.000000e+00> : vector<8xf32>
      %114 = vector.multi_reduction <add>, %110, %cst_65 [1] : vector<8x8xf32> to vector<8xf32>
      %115 = vector.shape_cast %114 : vector<8xf32> to vector<8x1xf32>
      %116 = arith.addf %113, %115 : vector<8x1xf32>
      %c2_66 = arith.constant 2 : index
      %c0_67 = arith.constant 0 : index
      %c0_68 = arith.constant 0 : index
      %117 = vector.load %arg11[%c2_66, %c0_67, %c0_68] : memref<4x8x1xf32, #tpu.memory_space<vmem>>, vector<1x8x1xf32>
      %118 = vector.shape_cast %117 : vector<1x8x1xf32> to vector<8x1xf32>
      %119 = vector.shape_cast %116 : vector<8x1xf32> to vector<1x8x1xf32>
      tpu.vector_store %arg11[%c2_66, %c0_67, %c0_68], %119 {strides = array<i32>} : memref<4x8x1xf32, #tpu.memory_space<vmem>>, vector<1x8x1xf32>,
      %c2_69 = arith.constant 2 : index
      %c0_70 = arith.constant 0 : index
      %c0_71 = arith.constant 0 : index
      %120 = vector.load %arg12[%c2_69, %c0_70, %c0_71] : memref<4x8x8xf32, #tpu.memory_space<vmem>>, vector<1x8x8xf32>
      %121 = vector.shape_cast %120 : vector<1x8x8xf32> to vector<8x8xf32>
      %122 = vector.broadcast %107 : vector<8x1xf32> to vector<8x8xf32>
      %123 = arith.mulf %122, %121 : vector<8x8xf32>
      %124 = arith.truncf %110 : vector<8x8xf32> to vector<8x8xbf16>
      %cst_72 = arith.constant dense<0.000000e+00> : vector<8x8xf32>
      %125 = tpu.matmul %124, %98, %cst_72 {dimension_numbers = #tpu.dot_dimension_numbers<[1], [0], [0], [1], [0, 0, 1, 1], [], []>} : vector<8x8xbf16>, vector<8x8xbf16>, vector<8x8xf32> -> vector<8x8xf32>
      %126 = arith.addf %123, %125 : vector<8x8xf32>
      %c2_73 = arith.constant 2 : index
      %c0_74 = arith.constant 0 : index
      %c0_75 = arith.constant 0 : index
      %127 = vector.load %arg12[%c2_73, %c0_74, %c0_75] : memref<4x8x8xf32, #tpu.memory_space<vmem>>, vector<1x8x8xf32>
      %128 = vector.shape_cast %127 : vector<1x8x8xf32> to vector<8x8xf32>
      %129 = vector.shape_cast %126 : vector<8x8xf32> to vector<1x8x8xf32>
      tpu.vector_store %arg12[%c2_73, %c0_74, %c0_75], %129 {strides = array<i32>} : memref<4x8x8xf32, #tpu.memory_space<vmem>>, vector<1x8x8xf32>,
      %c2_76 = arith.constant 2 : index
      %c0_77 = arith.constant 0 : index
      %c0_78 = arith.constant 0 : index
      %130 = vector.load %arg10[%c2_76, %c0_77, %c0_78] : memref<4x8x1xf32, #tpu.memory_space<vmem>>, vector<1x8x1xf32>
      %131 = vector.shape_cast %130 : vector<1x8x1xf32> to vector<8x1xf32>
      %132 = vector.shape_cast %105 : vector<8x1xf32> to vector<1x8x1xf32>
      tpu.vector_store %arg10[%c2_76, %c0_77, %c0_78], %132 {strides = array<i32>} : memref<4x8x1xf32, #tpu.memory_space<vmem>>, vector<1x8x1xf32>,
      %c0_79 = arith.constant 0 : index
      %c24 = arith.constant 24 : index
      %133 = vector.load %arg9[%c0_79, %c24] : memref<8x32xbf16, #tpu.memory_space<vmem>>, vector<8x8xbf16>
      %134 = vector.extract_strided_slice %13 {offsets = [0, 24], sizes = [8, 8], strides = [1, 1]} : vector<8x32xbf16> to vector<8x8xbf16>
      %135 = vector.extract_strided_slice %15 {offsets = [0, 24], sizes = [8, 8], strides = [1, 1]} : vector<8x32xbf16> to vector<8x8xbf16>
      %cst_80 = arith.constant dense<0.000000e+00> : vector<8x8xf32>
      %136 = tpu.matmul %133, %134, %cst_80 {dimension_numbers = #tpu.dot_dimension_numbers<[1], [1], [0], [0], [0, 0, 1, 0], [], []>} : vector<8x8xbf16>, vector<8x8xbf16>, vector<8x8xf32> -> vector<8x8xf32>
      %137 = arith.addf %136, %21 : vector<8x8xf32>
      %c3 = arith.constant 3 : index
      %c0_81 = arith.constant 0 : index
      %c0_82 = arith.constant 0 : index
      %138 = vector.load %arg10[%c3, %c0_81, %c0_82] : memref<4x8x1xf32, #tpu.memory_space<vmem>>, vector<1x8x1xf32>
      %139 = vector.shape_cast %138 : vector<1x8x1xf32> to vector<8x1xf32>
      %cst_83 = arith.constant dense<0xFF800000> : vector<8xf32>
      %140 = vector.multi_reduction <maximumf>, %137, %cst_83 [1] : vector<8x8xf32> to vector<8xf32>
      %141 = vector.shape_cast %140 : vector<8xf32> to vector<8x1xf32>
      %142 = arith.maximumf %139, %141 : vector<8x1xf32>
      %143 = arith.subf %139, %142 : vector<8x1xf32>
      %144 = math.exp %143 : vector<8x1xf32>
      %145 = vector.broadcast %142 : vector<8x1xf32> to vector<8x8xf32>
      %146 = arith.subf %137, %145 : vector<8x8xf32>
      %147 = math.exp %146 : vector<8x8xf32>
      %c3_84 = arith.constant 3 : index
      %c0_85 = arith.constant 0 : index
      %c0_86 = arith.constant 0 : index
      %148 = vector.load %arg11[%c3_84, %c0_85, %c0_86] : memref<4x8x1xf32, #tpu.memory_space<vmem>>, vector<1x8x1xf32>
      %149 = vector.shape_cast %148 : vector<1x8x1xf32> to vector<8x1xf32>
      %150 = arith.mulf %144, %149 : vector<8x1xf32>
      %cst_87 = arith.constant dense<0.000000e+00> : vector<8xf32>
      %151 = vector.multi_reduction <add>, %147, %cst_87 [1] : vector<8x8xf32> to vector<8xf32>
      %152 = vector.shape_cast %151 : vector<8xf32> to vector<8x1xf32>
      %153 = arith.addf %150, %152 : vector<8x1xf32>
      %c3_88 = arith.constant 3 : index
      %c0_89 = arith.constant 0 : index
      %c0_90 = arith.constant 0 : index
      %154 = vector.load %arg11[%c3_88, %c0_89, %c0_90] : memref<4x8x1xf32, #tpu.memory_space<vmem>>, vector<1x8x1xf32>
      %155 = vector.shape_cast %154 : vector<1x8x1xf32> to vector<8x1xf32>
      %156 = vector.shape_cast %153 : vector<8x1xf32> to vector<1x8x1xf32>
      tpu.vector_store %arg11[%c3_88, %c0_89, %c0_90], %156 {strides = array<i32>} : memref<4x8x1xf32, #tpu.memory_space<vmem>>, vector<1x8x1xf32>,
      %c3_91 = arith.constant 3 : index
      %c0_92 = arith.constant 0 : index
      %c0_93 = arith.constant 0 : index
      %157 = vector.load %arg12[%c3_91, %c0_92, %c0_93] : memref<4x8x8xf32, #tpu.memory_space<vmem>>, vector<1x8x8xf32>
      %158 = vector.shape_cast %157 : vector<1x8x8xf32> to vector<8x8xf32>
      %159 = vector.broadcast %144 : vector<8x1xf32> to vector<8x8xf32>
      %160 = arith.mulf %159, %158 : vector<8x8xf32>
      %161 = arith.truncf %147 : vector<8x8xf32> to vector<8x8xbf16>
      %cst_94 = arith.constant dense<0.000000e+00> : vector<8x8xf32>
      %162 = tpu.matmul %161, %135, %cst_94 {dimension_numbers = #tpu.dot_dimension_numbers<[1], [0], [0], [1], [0, 0, 1, 1], [], []>} : vector<8x8xbf16>, vector<8x8xbf16>, vector<8x8xf32> -> vector<8x8xf32>
      %163 = arith.addf %160, %162 : vector<8x8xf32>
      %c3_95 = arith.constant 3 : index
      %c0_96 = arith.constant 0 : index
      %c0_97 = arith.constant 0 : index
      %164 = vector.load %arg12[%c3_95, %c0_96, %c0_97] : memref<4x8x8xf32, #tpu.memory_space<vmem>>, vector<1x8x8xf32>
      %165 = vector.shape_cast %164 : vector<1x8x8xf32> to vector<8x8xf32>
      %166 = vector.shape_cast %163 : vector<8x8xf32> to vector<1x8x8xf32>
      tpu.vector_store %arg12[%c3_95, %c0_96, %c0_97], %166 {strides = array<i32>} : memref<4x8x8xf32, #tpu.memory_space<vmem>>, vector<1x8x8xf32>,
      %c3_98 = arith.constant 3 : index
      %c0_99 = arith.constant 0 : index
      %c0_100 = arith.constant 0 : index
      %167 = vector.load %arg10[%c3_98, %c0_99, %c0_100] : memref<4x8x1xf32, #tpu.memory_space<vmem>>, vector<1x8x1xf32>
      %168 = vector.shape_cast %167 : vector<1x8x1xf32> to vector<8x1xf32>
      %169 = vector.shape_cast %142 : vector<8x1xf32> to vector<1x8x1xf32>
      tpu.vector_store %arg10[%c3_98, %c0_99, %c0_100], %169 {strides = array<i32>} : memref<4x8x1xf32, #tpu.memory_space<vmem>>, vector<1x8x1xf32>,
    } else {
    }
    %c0_i32_3 = arith.constant 0 : i32
    %9 = arith.cmpi eq, %arg2, %c0_i32_3 : i32
    %10 = arith.extui %9 : i1 to i32
    %c0_i32_4 = arith.constant 0 : i32
    %11 = arith.cmpi ne, %10, %c0_i32_4 : i32
    scf.if %11 {
      %c0 = arith.constant 0 : index
      %c0_5 = arith.constant 0 : index
      %c0_6 = arith.constant 0 : index
      %12 = vector.load %arg11[%c0, %c0_5, %c0_6] : memref<4x8x1xf32, #tpu.memory_space<vmem>>, vector<1x8x1xf32>
      %13 = vector.shape_cast %12 : vector<1x8x1xf32> to vector<8x1xf32>
      %14 = tpu.reciprocal %13 {approx = true} : vector<8x1xf32> -> vector<8x1xf32>
      %c0_7 = arith.constant 0 : index
      %c0_8 = arith.constant 0 : index
      %c0_9 = arith.constant 0 : index
      %15 = vector.load %arg12[%c0_7, %c0_8, %c0_9] : memref<4x8x8xf32, #tpu.memory_space<vmem>>, vector<1x8x8xf32>
      %16 = vector.shape_cast %15 : vector<1x8x8xf32> to vector<8x8xf32>
      %17 = vector.broadcast %14 : vector<8x1xf32> to vector<8x8xf32>
      %18 = arith.mulf %16, %17 : vector<8x8xf32>
      %19 = arith.truncf %18 : vector<8x8xf32> to vector<8x8xbf16>
      %c0_10 = arith.constant 0 : index
      %c0_11 = arith.constant 0 : index
      %20 = vector.load %arg13[%c0_10, %c0_11] : memref<8x32xbf16, #tpu.memory_space<vmem>>, vector<8x8xbf16>
      tpu.vector_store %arg13[%c0_10, %c0_11], %19 {strides = array<i32>} : memref<8x32xbf16, #tpu.memory_space<vmem>>, vector<8x8xbf16>,
      %c1 = arith.constant 1 : index
      %c0_12 = arith.constant 0 : index
      %c0_13 = arith.constant 0 : index
      %21 = vector.load %arg11[%c1, %c0_12, %c0_13] : memref<4x8x1xf32, #tpu.memory_space<vmem>>, vector<1x8x1xf32>
      %22 = vector.shape_cast %21 : vector<1x8x1xf32> to vector<8x1xf32>
      %23 = tpu.reciprocal %22 {approx = true} : vector<8x1xf32> -> vector<8x1xf32>
      %c1_14 = arith.constant 1 : index
      %c0_15 = arith.constant 0 : index
      %c0_16 = arith.constant 0 : index
      %24 = vector.load %arg12[%c1_14, %c0_15, %c0_16] : memref<4x8x8xf32, #tpu.memory_space<vmem>>, vector<1x8x8xf32>
      %25 = vector.shape_cast %24 : vector<1x8x8xf32> to vector<8x8xf32>
      %26 = vector.broadcast %23 : vector<8x1xf32> to vector<8x8xf32>
      %27 = arith.mulf %25, %26 : vector<8x8xf32>
      %28 = arith.truncf %27 : vector<8x8xf32> to vector<8x8xbf16>
      %c0_17 = arith.constant 0 : index
      %c8 = arith.constant 8 : index
      %29 = vector.load %arg13[%c0_17, %c8] : memref<8x32xbf16, #tpu.memory_space<vmem>>, vector<8x8xbf16>
      tpu.vector_store %arg13[%c0_17, %c8], %28 {strides = array<i32>} : memref<8x32xbf16, #tpu.memory_space<vmem>>, vector<8x8xbf16>,
      %c2 = arith.constant 2 : index
      %c0_18 = arith.constant 0 : index
      %c0_19 = arith.constant 0 : index
      %30 = vector.load %arg11[%c2, %c0_18, %c0_19] : memref<4x8x1xf32, #tpu.memory_space<vmem>>, vector<1x8x1xf32>
      %31 = vector.shape_cast %30 : vector<1x8x1xf32> to vector<8x1xf32>
      %32 = tpu.reciprocal %31 {approx = true} : vector<8x1xf32> -> vector<8x1xf32>
      %c2_20 = arith.constant 2 : index
      %c0_21 = arith.constant 0 : index
      %c0_22 = arith.constant 0 : index
      %33 = vector.load %arg12[%c2_20, %c0_21, %c0_22] : memref<4x8x8xf32, #tpu.memory_space<vmem>>, vector<1x8x8xf32>
      %34 = vector.shape_cast %33 : vector<1x8x8xf32> to vector<8x8xf32>
      %35 = vector.broadcast %32 : vector<8x1xf32> to vector<8x8xf32>
      %36 = arith.mulf %34, %35 : vector<8x8xf32>
      %37 = arith.truncf %36 : vector<8x8xf32> to vector<8x8xbf16>
      %c0_23 = arith.constant 0 : index
      %c16 = arith.constant 16 : index
      %38 = vector.load %arg13[%c0_23, %c16] : memref<8x32xbf16, #tpu.memory_space<vmem>>, vector<8x8xbf16>
      tpu.vector_store %arg13[%c0_23, %c16], %37 {strides = array<i32>} : memref<8x32xbf16, #tpu.memory_space<vmem>>, vector<8x8xbf16>,
      %c3 = arith.constant 3 : index
      %c0_24 = arith.constant 0 : index
      %c0_25 = arith.constant 0 : index
      %39 = vector.load %arg11[%c3, %c0_24, %c0_25] : memref<4x8x1xf32, #tpu.memory_space<vmem>>, vector<1x8x1xf32>
      %40 = vector.shape_cast %39 : vector<1x8x1xf32> to vector<8x1xf32>
      %41 = tpu.reciprocal %40 {approx = true} : vector<8x1xf32> -> vector<8x1xf32>
      %c3_26 = arith.constant 3 : index
      %c0_27 = arith.constant 0 : index
      %c0_28 = arith.constant 0 : index
      %42 = vector.load %arg12[%c3_26, %c0_27, %c0_28] : memref<4x8x8xf32, #tpu.memory_space<vmem>>, vector<1x8x8xf32>
      %43 = vector.shape_cast %42 : vector<1x8x8xf32> to vector<8x8xf32>
      %44 = vector.broadcast %41 : vector<8x1xf32> to vector<8x8xf32>
      %45 = arith.mulf %43, %44 : vector<8x8xf32>
      %46 = arith.truncf %45 : vector<8x8xf32> to vector<8x8xbf16>
      %c0_29 = arith.constant 0 : index
      %c24 = arith.constant 24 : index
      %47 = vector.load %arg13[%c0_29, %c24] : memref<8x32xbf16, #tpu.memory_space<vmem>>, vector<8x8xbf16>
      tpu.vector_store %arg13[%c0_29, %c24], %46 {strides = array<i32>} : memref<8x32xbf16, #tpu.memory_space<vmem>>, vector<8x8xbf16>,
      %c0_30 = arith.constant 0 : index
      %c0_31 = arith.constant 0 : index
      %48 = vector.load %arg13[%c0_30, %c0_31] : memref<8x32xbf16, #tpu.memory_space<vmem>>, vector<8x32xbf16>
      %c0_32 = arith.constant 0 : index
      %c0_33 = arith.constant 0 : index
      %49 = vector.load %arg7[%c0_32, %c0_33] : memref<32x32xbf16, #tpu.memory_space<vmem>>, vector<32x32xbf16>
      %cst = arith.constant dense<0.000000e+00> : vector<8x32xf32>
      %50 = tpu.matmul %48, %49, %cst {dimension_numbers = #tpu.dot_dimension_numbers<[1], [0], [0], [1], [0, 0, 1, 1], [], []>} : vector<8x32xbf16>, vector<32x32xbf16>, vector<8x32xf32> -> vector<8x32xf32>
      %c0_34 = arith.constant 0 : index
      %c0_35 = arith.constant 0 : index
      %c0_36 = arith.constant 0 : index
      %51 = vector.load %arg8[%c0_34, %c0_35, %c0_36] : memref<1x8x32xf32, #tpu.memory_space<vmem>>, vector<1x8x32xf32>
      %52 = vector.shape_cast %51 : vector<1x8x32xf32> to vector<8x32xf32>
      %53 = vector.shape_cast %50 : vector<8x32xf32> to vector<1x8x32xf32>
      tpu.vector_store %arg8[%c0_34, %c0_35, %c0_36], %53 {strides = array<i32>} : memref<1x8x32xf32, #tpu.memory_space<vmem>>, vector<1x8x32xf32>,
    } else {
    }
    return
  }
  func.func @transform_0(%arg0: i32, %arg1: i32, %arg2: i32) -> (i32, i32, i32) {
    %c0_i32 = arith.constant 0 : i32
    %c0_i32_0 = arith.constant 0 : i32
    return %arg0, %arg1, %c0_i32 : i32, i32, i32
  }
  func.func @transform_1(%arg0: i32, %arg1: i32, %arg2: i32) -> (i32, i32) {
    %c0_i32 = arith.constant 0 : i32
    %c0_i32_0 = arith.constant 0 : i32
    %c0_i32_1 = arith.constant 0 : i32
    return %c0_i32, %c0_i32_0 : i32, i32
  }
  func.func @transform_2(%arg0: i32, %arg1: i32, %arg2: i32) -> (i32, i32, i32) {
    %0 = arith.minsi %arg2, %arg1 : i32
    %c0_i32 = arith.constant 0 : i32
    %c0_i32_0 = arith.constant 0 : i32
    return %arg0, %0, %c0_i32 : i32, i32, i32
  }
  func.func @transform_3(%arg0: i32, %arg1: i32, %arg2: i32) -> (i32, i32, i32) {
    %0 = arith.minsi %arg2, %arg1 : i32
    %c0_i32 = arith.constant 0 : i32
    %c0_i32_0 = arith.constant 0 : i32
    return %arg0, %0, %c0_i32 : i32, i32, i32
  }
  func.func @transform_4(%arg0: i32, %arg1: i32, %arg2: i32) -> (i32, i32) {
    %c0_i32 = arith.constant 0 : i32
    %c0_i32_0 = arith.constant 0 : i32
    %c0_i32_1 = arith.constant 0 : i32
    return %c0_i32, %c0_i32_0 : i32, i32
  }
  func.func @transform_5(%arg0: i32, %arg1: i32, %arg2: i32) -> (i32, i32, i32) {
    %c0_i32 = arith.constant 0 : i32
    %c0_i32_0 = arith.constant 0 : i32
    return %arg0, %arg1, %c0_i32 : i32, i32, i32
  }
}

</mosaic_0001>

<llo_original>
// kernel: tpu_custom_call.1
$region0: #{tpu_custom_call.1}
  #allocation0 [shape = 'u32[]', space=smem, size = 0x4, offset = 0x4, fixed_abs, tag = 'smem constant byte address 0x4 - core index']
  #allocation1 [shape = 'u32[144,128]{1,0:T(1,128)}', space=vmem, size = 0x12000, scoped, tag = 'internal scratch']
  #allocation2 [shape = 'bf16[8,32]{1,0:T(8,128)(2,1)}', space=vmem, size = 0x800, scoped, tag = 'scratch operand']
  #allocation3 [shape = 'f32[4,8,1]{2,1,0:T(8,128)}', space=vmem, size = 0x4000, scoped, tag = 'scratch operand']
  #allocation4 [shape = 'f32[4,8,1]{2,1,0:T(8,128)}', space=vmem, size = 0x4000, scoped, tag = 'scratch operand']
  #allocation5 [shape = 'f32[4,8,8]{2,1,0:T(8,128)}', space=vmem, size = 0x4000, scoped, tag = 'scratch operand']
  #allocation6 [shape = 'bf16[8,32]{1,0:T(8,128)(2,1)}', space=vmem, size = 0x800, scoped, tag = 'scratch operand']
  %s0 = inlined_call_operand.hbm [shape: bf16[2,8,32], index: 0, kind: input, shape index: {}]
  %s1 = inlined_call_operand.hbm [shape: bf16[32,32], index: 1, kind: input, shape index: {}]
  %s2 = inlined_call_operand.hbm [shape: bf16[2,8,32], index: 2, kind: input, shape index: {}]
  %s3 = inlined_call_operand.vmem [shape: bf16[2,8,32], index: 3, kind: input, shape index: {}]
  %s4 = inlined_call_operand.hbm [shape: bf16[32,32], index: 4, kind: input, shape index: {}]
  %s5 = inlined_call_operand.hbm [shape: f32[2,8,32], index: 5, kind: output, shape index: {}]
  %s6 = sld [smem:[#allocation0]]
  $region85: #{tpu_custom_call.1} parent=0
    _
  %s8 = ssub.s32 1, %s6
  %s9 = scalar_select 0, %s8, %s6
  $region1: #{tpu_custom_call.1} parent=0
    #allocation7 [shape = 'u8[4096]{0}', space=vmem, size = 0x1000, scoped, tag = 'input window, operand 0']
    #allocation8 [shape = 's32[2]{0}', space=sflag, size = 0x8, scoped, tag = 'scoped memory for tpu_custom_call.1']
    #allocation9 [shape = 's32[2]{0}', space=sflag, size = 0x8, scoped, tag = 'scoped memory for tpu_custom_call.1']
    #allocation10 [shape = 'u8[8192]{0}', space=vmem, size = 0x2000, scoped, tag = 'input window, operand 1, single buffered']
    #allocation11 [shape = 's32[1]{0}', space=sflag, size = 0x4, scoped, tag = 'scoped memory for tpu_custom_call.1']
    #allocation12 [shape = 'u8[4096]{0}', space=vmem, size = 0x1000, scoped, tag = 'input window, operand 2']
    #allocation13 [shape = 'u8[8192]{0}', space=vmem, size = 0x2000, scoped, tag = 'input window, operand 4, single buffered']
    #allocation14 [shape = 'u8[8192]{0}', space=vmem, size = 0x2000, scoped, tag = 'output window, operand 0']
    %10 = vsyncpa [#allocation8], 0
    %s11 = scalar_lea.sflag [#allocation8], 1
    %12 = vsyncpa %s11, 0
    %13 = vsyncpa [#allocation11], 0
    %14 = vsyncpa [#allocation9], 0
    %s15 = scalar_lea.sflag [#allocation9], 1
    %16 = vsyncpa %s15, 0
    loop: start=0, step=1, limit=4
    $region2: #{tpu_custom_call.1} parent=1 // loop_pre_header
      _
    $region3: #{tpu_custom_call.1} parent=1 // loop_header
      %s18 = sphi 0, %s22
      %p19 = scmp.ge.s32.totalorder %s18, 4
      %s25 = sphi 0, %s44
      %s26 = sphi 0, %s40
      %s27 = sphi 0, %s36
      %s28 = sphi 0, %s25
      %s29 = sphi 0, %s26
      %s30 = sphi 0, %s27
      %s31 = sphi 0, %s28
      %s32 = sphi 0, %s29
      %s33 = sphi 0, %s30
      %s49 = sphi 0, %s51
      %s52 = sphi 0, %s49
      %s53 = sphi 0, %s52
      %s69 = sphi 0, %s53
      %s73 = sphi 0, %s73
      %s75 = sphi 0, %s73
      %s76 = sphi 0, %s75
      %s90 = sphi 0, %s76
      %s102 = sphi 0, %s104
      %s105 = sphi 0, %s102
      %s106 = sphi 0, %s105
      %s122 = sphi 0, %s106
      %s134 = sphi 0, %s136
      %s137 = sphi 0, %s134
      %s138 = sphi 0, %s137
      %s154 = sphi 0, %s138
      %s158 = sphi 0, %s158
      %s160 = sphi 0, %s158
      %s161 = sphi 0, %s160
      %s175 = sphi 0, %s161
      %s183 = sphi 0, %s185
      %s186 = sphi 0, %s183
      %s187 = sphi 0, %s186
      %s203 = sphi 0, %s187
    $region4: #{tpu_custom_call.1} parent=1 // loop_header_branch
      %21 = sbr.rel (%p19) target = $region8
    $region5: #{tpu_custom_call.1} parent=1 // loop_body
      %s23 = ssub.s32 %s18, 1
      %s24 = ssub.s32 %s18, 2
      %s34 = sadd.s32 1, %s27
      %p35 = scmp.ge.s32.totalorder %s34, 1
      %s36 = scalar_select %p35, 0, %s34
      %s37 = sadd.s32 1, %s26
      %s38 = scalar_select %p35, %s37, %s26
      %p39 = scmp.ge.s32.totalorder %s38, 1
      %s40 = scalar_select %p39, 0, %s38
      %s41 = sadd.s32 1, %s25
      %s42 = scalar_select %p39, %s41, %s25
      %p43 = scmp.ge.s32.totalorder %s42, 2
      %s44 = scalar_select %p43, 0, %s42
      %s45 = ssub.s32 %s25, %s44
      %s46 = ssub.s32 %s26, %s40
      %s47 = sor.u32 %s45, %s46
      %p48 = scmp.eq.s32.totalorder %s47, 0
      %s50 = sadd.s32 %s49, 1
      %s51 = scalar_select %p48, %s49, %s50
      %p54 = pneg %p48
      %p55 = scmp.eq.s32.totalorder %s18, 1
      %p56 = por %p54, %p55
      %p57 = scmp.ne.s32.totalorder %s49, %s52
      %p58 = scmp.eq.s32.totalorder %s18, 0
      %p59 = por %p57, %p58
      %p60 = scmp.ne.s32.totalorder %s49, %s52
      %p61 = scmp.eq.s32.totalorder %s23, 1
      %p62 = por %p60, %p61
      %p63 = scmp.ne.s32.totalorder %s52, %s53
      %p64 = scmp.eq.s32.totalorder %s23, 0
      %p65 = por %p63, %p64
      %p66 = scmp.ne.s32.totalorder %s52, %s53
      %p67 = scmp.eq.s32.totalorder %s24, 1
      %p68 = por %p66, %p67
      %p70 = scmp.ne.s32.totalorder %s53, %s69
      %p71 = scmp.eq.s32.totalorder %s24, 0
      %p72 = por %p70, %p71
      %s74 = sadd.s32 %s73, 1
      %p77 = scmp.eq.s32.totalorder %s18, 1
      %p78 = scmp.ne.s32.totalorder %s73, %s75
      %p79 = scmp.eq.s32.totalorder %s18, 0
      %p80 = por %p78, %p79
      %p81 = scmp.ne.s32.totalorder %s73, %s75
      %p82 = scmp.eq.s32.totalorder %s23, 1
      %p83 = por %p81, %p82
      %p84 = scmp.ne.s32.totalorder %s75, %s76
      %p85 = scmp.eq.s32.totalorder %s23, 0
      %p86 = por %p84, %p85
      %p87 = scmp.ne.s32.totalorder %s75, %s76
      %p88 = scmp.eq.s32.totalorder %s24, 1
      %p89 = por %p87, %p88
      %p91 = scmp.ne.s32.totalorder %s76, %s90
      %p92 = scmp.eq.s32.totalorder %s24, 0
      %p93 = por %p91, %p92
      %p94 = scmp.lt.s32.totalorder %s27, %s26
      %s95 = scalar_select %p94, %s27, %s26
      %p96 = scmp.lt.s32.totalorder %s36, %s40
      %s97 = scalar_select %p96, %s36, %s40
      %s98 = ssub.s32 %s25, %s44
      %s99 = ssub.s32 %s95, %s97
      %s100 = sor.u32 %s98, %s99
      %p101 = scmp.eq.s32.totalorder %s100, 0
      %s103 = sadd.s32 %s102, 1
      %s104 = scalar_select %p101, %s102, %s103
      %p107 = pneg %p101
      %p108 = scmp.eq.s32.totalorder %s18, 1
      %p109 = por %p107, %p108
      %p110 = scmp.ne.s32.totalorder %s102, %s105
      %p111 = scmp.eq.s32.totalorder %s18, 0
      %p112 = por %p110, %p111
      %p113 = scmp.ne.s32.totalorder %s102, %s105
      %p114 = scmp.eq.s32.totalorder %s23, 1
      %p115 = por %p113, %p114
      %p116 = scmp.ne.s32.totalorder %s105, %s106
      %p117 = scmp.eq.s32.totalorder %s23, 0
      %p118 = por %p116, %p117
      %p119 = scmp.ne.s32.totalorder %s105, %s106
      %p120 = scmp.eq.s32.totalorder %s24, 1
      %p121 = por %p119, %p120
      %p123 = scmp.ne.s32.totalorder %s106, %s122
      %p124 = scmp.eq.s32.totalorder %s24, 0
      %p125 = por %p123, %p124
      %p126 = scmp.lt.s32.totalorder %s27, %s26
      %s127 = scalar_select %p126, %s27, %s26
      %p128 = scmp.lt.s32.totalorder %s36, %s40
      %s129 = scalar_select %p128, %s36, %s40
      %s130 = ssub.s32 %s25, %s44
      %s131 = ssub.s32 %s127, %s129
      %s132 = sor.u32 %s130, %s131
      %p133 = scmp.eq.s32.totalorder %s132, 0
      %s135 = sadd.s32 %s134, 1
      %s136 = scalar_select %p133, %s134, %s135
      %p139 = pneg %p133
      %p140 = scmp.eq.s32.totalorder %s18, 1
      %p141 = por %p139, %p140
      %p142 = scmp.ne.s32.totalorder %s134, %s137
      %p143 = scmp.eq.s32.totalorder %s18, 0
      %p144 = por %p142, %p143
      %p145 = scmp.ne.s32.totalorder %s134, %s137
      %p146 = scmp.eq.s32.totalorder %s23, 1
      %p147 = por %p145, %p146
      %p148 = scmp.ne.s32.totalorder %s137, %s138
      %p149 = scmp.eq.s32.totalorder %s23, 0
      %p150 = por %p148, %p149
      %p151 = scmp.ne.s32.totalorder %s137, %s138
      %p152 = scmp.eq.s32.totalorder %s24, 1
      %p153 = por %p151, %p152
      %p155 = scmp.ne.s32.totalorder %s138, %s154
      %p156 = scmp.eq.s32.totalorder %s24, 0
      %p157 = por %p155, %p156
      %s159 = sadd.s32 %s158, 1
      %p162 = scmp.eq.s32.totalorder %s18, 1
      %p163 = scmp.ne.s32.totalorder %s158, %s160
      %p164 = scmp.eq.s32.totalorder %s18, 0
      %p165 = por %p163, %p164
      %p166 = scmp.ne.s32.totalorder %s158, %s160
      %p167 = scmp.eq.s32.totalorder %s23, 1
      %p168 = por %p166, %p167
      %p169 = scmp.ne.s32.totalorder %s160, %s161
      %p170 = scmp.eq.s32.totalorder %s23, 0
      %p171 = por %p169, %p170
      %p172 = scmp.ne.s32.totalorder %s160, %s161
      %p173 = scmp.eq.s32.totalorder %s24, 1
      %p174 = por %p172, %p173
      %p176 = scmp.ne.s32.totalorder %s161, %s175
      %p177 = scmp.eq.s32.totalorder %s24, 0
      %p178 = por %p176, %p177
      %s179 = ssub.s32 %s25, %s44
      %s180 = ssub.s32 %s26, %s40
      %s181 = sor.u32 %s179, %s180
      %p182 = scmp.eq.s32.totalorder %s181, 0
      %s184 = sadd.s32 %s183, 1
      %s185 = scalar_select %p182, %s183, %s184
      %p188 = pneg %p182
      %p189 = scmp.eq.s32.totalorder %s18, 1
      %p190 = por %p188, %p189
      %p191 = scmp.ne.s32.totalorder %s183, %s186
      %p192 = scmp.eq.s32.totalorder %s18, 0
      %p193 = por %p191, %p192
      %p194 = scmp.ne.s32.totalorder %s183, %s186
      %p195 = scmp.eq.s32.totalorder %s23, 1
      %p196 = por %p194, %p195
      %p197 = scmp.ne.s32.totalorder %s186, %s187
      %p198 = scmp.eq.s32.totalorder %s23, 0
      %p199 = por %p197, %p198
      %p200 = scmp.ne.s32.totalorder %s186, %s187
      %p201 = scmp.eq.s32.totalorder %s24, 1
      %p202 = por %p200, %p201
      %p204 = scmp.ne.s32.totalorder %s187, %s203
      %p205 = scmp.eq.s32.totalorder %s24, 0
      %p206 = por %p204, %p205
      %p207 = scmp.le.s32.totalorder 1, %s18
      %p208 = scmp.lt.s32.totalorder %s18, 3
      %p209 = pnand %p207, %p208
      %p210 = pneg %p209
      // Predicated region
      $region9: #{tpu_custom_call.1} parent=5 // pred_check
        _
      $region10: #{tpu_custom_call.1} parent=5 // pred_check_branch
        %212 = sbr.rel (%p209) target = $region12
      $region11: #{tpu_custom_call.1} parent=5 // pred_region
        %s213 = ssub.s32 %s18, 1
        // Predicated region
        $region13: #{tpu_custom_call.1} parent=11 // pred_check
          %p214 = pneg %p86
        $region14: #{tpu_custom_call.1} parent=11 // pred_check_branch
          %216 = sbr.rel (%p214) target = $region16
        $region15: #{tpu_custom_call.1} parent=11 // pred_region
          %s218 = ssub.s32 256, 256
          %219 = vsyncadd [#allocation11], %s218
          %s220 = sshll.u32 [#allocation10], 4
          %s221 = int_to_ptr.vmem [resolvable:$true] %s220
          %226 = dma.hbm_to_vmem [thread:$0]  %s1, 256, %s221, [#allocation11], 64, 64, 4
        $region16: #{tpu_custom_call.1} parent=11 // pred_fallthru
          _
        // Predicated region
        $region17: #{tpu_custom_call.1} parent=11 // pred_check
          %p227 = pneg %p171
        $region18: #{tpu_custom_call.1} parent=11 // pred_check_branch
          %229 = sbr.rel (%p227) target = $region20
        $region19: #{tpu_custom_call.1} parent=11 // pred_region
          %s231 = ssub.s32 256, 256
          %232 = vsyncadd [#allocation11], %s231
          %s233 = sshll.u32 [#allocation13], 4
          %s234 = int_to_ptr.vmem [resolvable:$true] %s233
          %239 = dma.hbm_to_vmem [thread:$0]  %s4, 256, %s234, [#allocation11], 64, 64, 4
        $region20: #{tpu_custom_call.1} parent=11 // pred_fallthru
          _
      $region12: #{tpu_custom_call.1} parent=5 // pred_fallthru
        _
      %p240 = scmp.lt.s32.totalorder %s18, 2
      // Predicated region
      $region21: #{tpu_custom_call.1} parent=5 // pred_check
        %p241 = pneg %p240
      $region22: #{tpu_custom_call.1} parent=5 // pred_check_branch
        %243 = sbr.rel (%p241) target = $region24
      $region23: #{tpu_custom_call.1} parent=5 // pred_region
        // Predicated region
        $region25: #{tpu_custom_call.1} parent=23 // pred_check
          %p244 = pneg %p59
        $region26: #{tpu_custom_call.1} parent=23 // pred_check_branch
          %246 = sbr.rel (%p244) target = $region28
        $region27: #{tpu_custom_call.1} parent=23 // pred_region
          %s247 = sand.u32 %s18, 1
          %s248 = scalar_lea.sflag [#allocation8], %s247
          %s249 = sand.u32 %s49, 1
          %s250 = smul.addr %s249, 4
          %s251 = scalar_lea.vmem [#allocation7], %s250
          %s253 = ssub.s32 64, 64
          %254 = vsyncadd %s248, %s253
          %s255 = sadd.s32 %s26, %s25
          %s256 = smul.addr %s255, 64
          %s257 = scalar_lea.hbm %s0, %s256
          %s259 = sshll.u32 %s251, 4
          %s260 = int_to_ptr.vmem [resolvable:$true] %s259
          %262 = dma.hbm_to_vmem [thread:$0]  %s257, 64, %s260, %s248
        $region28: #{tpu_custom_call.1} parent=23 // pred_fallthru
          _
        // Predicated region
        $region29: #{tpu_custom_call.1} parent=23 // pred_check
          %p263 = pneg %p112
        $region30: #{tpu_custom_call.1} parent=23 // pred_check_branch
          %265 = sbr.rel (%p263) target = $region32
        $region31: #{tpu_custom_call.1} parent=23 // pred_region
          %s266 = sand.u32 %s18, 1
          %s267 = scalar_lea.sflag [#allocation8], %s266
          %s268 = sand.u32 %s102, 1
          %s269 = smul.addr %s268, 4
          %s270 = scalar_lea.vmem [#allocation12], %s269
          %p271 = scmp.lt.s32.totalorder %s27, %s26
          %s272 = scalar_select %p271, %s27, %s26
          %s274 = ssub.s32 64, 64
          %275 = vsyncadd %s267, %s274
          %s276 = sadd.s32 %s272, %s25
          %s277 = smul.addr %s276, 64
          %s278 = scalar_lea.hbm %s2, %s277
          %s280 = sshll.u32 %s270, 4
          %s281 = int_to_ptr.vmem [resolvable:$true] %s280
          %283 = dma.hbm_to_vmem [thread:$0]  %s278, 64, %s281, %s267
        $region32: #{tpu_custom_call.1} parent=23 // pred_fallthru
          _
        // Predicated region
        $region33: #{tpu_custom_call.1} parent=23 // pred_check
          %p284 = pneg %p144
        $region34: #{tpu_custom_call.1} parent=23 // pred_check_branch
          %286 = sbr.rel (%p284) target = $region36
        $region35: #{tpu_custom_call.1} parent=23 // pred_region
          %p287 = scmp.lt.s32.totalorder %s27, %s26
          %s288 = scalar_select %p287, %s27, %s26
          %p289 = scmp.lt.s32.totalorder %s25, 1
          %s290 = scalar_select %p289, %s25, 1
          %p291 = scmp.lt.s32.totalorder %s288, 0
          %s292 = scalar_select %p291, %s288, 0
          %s293 = sadd.s32 %s292, %s290
          %s294 = smul.addr %s293, 4
          %s295 = scalar_lea.vmem %s3, %s294
          %p296 = scmp.lt.s32.totalorder %s27, %s26
          %s297 = scalar_select %p296, %s27, %s26
        $region36: #{tpu_custom_call.1} parent=23 // pred_fallthru
          _
      $region24: #{tpu_custom_call.1} parent=5 // pred_fallthru
        _
      %p298 = scmp.le.s32.totalorder 1, %s18
      %p299 = scmp.lt.s32.totalorder %s18, 3
      %p300 = pnand %p298, %p299
      %p301 = pneg %p300
      // Predicated region
      $region37: #{tpu_custom_call.1} parent=5 // pred_check
        _
      $region38: #{tpu_custom_call.1} parent=5 // pred_check_branch
        %303 = sbr.rel (%p300) target = $region40
      $region39: #{tpu_custom_call.1} parent=5 // pred_region
        %s304 = ssub.s32 %s18, 1
        %s305 = sand.u32 %s23, 1
        %s306 = scalar_lea.sflag [#allocation8], %s305
        %s307 = sand.u32 %s52, 1
        %s308 = smul.addr %s307, 4
        %s309 = scalar_lea.vmem [#allocation7], %s308
        // Predicated region
        $region41: #{tpu_custom_call.1} parent=39 // pred_check
          %p310 = pneg %p65
        $region42: #{tpu_custom_call.1} parent=39 // pred_check_branch
          %312 = sbr.rel (%p310) target = $region44
        $region43: #{tpu_custom_call.1} parent=39 // pred_region
          %313 = dma.done %s306, 64
        $region44: #{tpu_custom_call.1} parent=39 // pred_fallthru
          _
        // Predicated region
        $region45: #{tpu_custom_call.1} parent=39 // pred_check
          %p314 = pneg %p86
        $region46: #{tpu_custom_call.1} parent=39 // pred_check_branch
          %316 = sbr.rel (%p314) target = $region48
        $region47: #{tpu_custom_call.1} parent=39 // pred_region
          %317 = dma.done [#allocation11], 256
        $region48: #{tpu_custom_call.1} parent=39 // pred_fallthru
          _
        %s318 = sand.u32 %s23, 1
        %s319 = scalar_lea.sflag [#allocation8], %s318
        %s320 = sand.u32 %s105, 1
        %s321 = smul.addr %s320, 4
        %s322 = scalar_lea.vmem [#allocation12], %s321
        // Predicated region
        $region49: #{tpu_custom_call.1} parent=39 // pred_check
          %p323 = pneg %p118
        $region50: #{tpu_custom_call.1} parent=39 // pred_check_branch
          %325 = sbr.rel (%p323) target = $region52
        $region51: #{tpu_custom_call.1} parent=39 // pred_region
          %326 = dma.done %s319, 64
        $region52: #{tpu_custom_call.1} parent=39 // pred_fallthru
          _
        // Predicated region
        $region53: #{tpu_custom_call.1} parent=39 // pred_check
          %p327 = pneg %p171
        $region54: #{tpu_custom_call.1} parent=39 // pred_check_branch
          %329 = sbr.rel (%p327) target = $region56
        $region55: #{tpu_custom_call.1} parent=39 // pred_region
          %330 = dma.done [#allocation11], 256
        $region56: #{tpu_custom_call.1} parent=39 // pred_fallthru
          _
        %s331 = sand.u32 %s23, 1
        %s332 = scalar_lea.sflag [#allocation8], %s331
        %s333 = sand.u32 %s52, 1
        %s334 = smul.addr %s333, 4
        %s335 = scalar_lea.vmem [#allocation7], %s334
        %p336 = pneg %p65
        %p337 = pneg %p62
        %p338 = pneg %p86
        %p339 = pneg %p83
        %s340 = sand.u32 %s23, 1
        %s341 = scalar_lea.sflag [#allocation8], %s340
        %s342 = sand.u32 %s105, 1
        %s343 = smul.addr %s342, 4
        %s344 = scalar_lea.vmem [#allocation12], %s343
        %p345 = pneg %p118
        %p346 = pneg %p115
        %p347 = scmp.lt.s32.totalorder %s30, %s29
        %s348 = scalar_select %p347, %s30, %s29
        %p349 = scmp.lt.s32.totalorder %s28, 1
        %s350 = scalar_select %p349, %s28, 1
        %p351 = scmp.lt.s32.totalorder %s348, 0
        %s352 = scalar_select %p351, %s348, 0
        %s353 = sadd.s32 %s352, %s350
        %s354 = smul.addr %s353, 4
        %s355 = scalar_lea.vmem %s3, %s354
        %p356 = pneg %p150
        %p357 = pneg %p147
        %p358 = pneg %p171
        %p359 = pneg %p168
        %p360 = pneg %p199
        %p361 = pneg %p196
        %s362 = sand.u32 %s186, 1
        %s363 = scalar_lea.sflag [#allocation9], %s362
        %s364 = sand.u32 %s186, 1
        %s365 = smul.addr %s364, 8
        %s366 = scalar_lea.vmem [#allocation14], %s365
        %p367 = scmp.lt.s32.totalorder %s30, %s29
        %s368 = scalar_select %p367, %s30, %s29
        %p369 = scmp.lt.s32.totalorder %s30, %s29
        %s370 = scalar_select %p369, %s30, %s29
        %p371 = scmp.lt.s32.totalorder %s28, 1
        %s372 = scalar_select %p371, %s28, 1
        %p373 = scmp.lt.s32.totalorder %s370, 0
        %s374 = scalar_select %p373, %s370, 0
        %s375 = sadd.s32 %s374, %s372
        %s376 = smul.addr %s375, 4
        %s377 = scalar_lea.vmem %s3, %s376
        %p378 = scmp.lt.s32.totalorder %s30, %s29
        %s379 = scalar_select %p378, %s30, %s29
        %p381 = scmp.eq.s32.totalorder %s30, 0
        // Predicated region
        $region57: #{tpu_custom_call.1} parent=39 // pred_check
          %p382 = pneg %p381
        $region58: #{tpu_custom_call.1} parent=39 // pred_check_branch
          %384 = sbr.rel (%p382) target = $region60
        $region59: #{tpu_custom_call.1} parent=39 // pred_region
          %v385 = vld [vmem:[%s309] sm:$0xf]
          %v386 = vld [vmem:[#allocation10] sm:$0xf]
          %v387 = vld [vmem:[#allocation10 + $0x4] sm:$0xf]
          %v388 = vld [vmem:[#allocation10 + $0x8] sm:$0xf]
          %v389 = vld [vmem:[#allocation10 + $0xc] sm:$0xf]
          %v394 = vunpack.c.l.b16 %v386
          %v395 = vunpack.c.l.b16 %v387
          %v396 = vunpack.c.l.b16 %v388
          %v397 = vunpack.c.l.b16 %v389
          %v398 = vpack.c.b16 %v395, %v394
          %v399 = vpack.c.b16 %v397, %v396
          %vm402 = vcmask 261120
          %v404 = vsel %vm402, %v385, 0
          %406 = vmatprep.subr.bf16.mxu0 0
          %407 = vmatpush1.bf16.msra.mxu0 %v398
          %408 = vmatprep.subr.bf16.mxu0 0
          %409 = vmatpush1.bf16.msra.mxu0 %v399
          %410 = vmatprep.subr.bf16.mxu0 0
          %411 = vmatpush1.bf16.msra.mxu0 0
          %412 = vmatprep.subr.bf16.mxu0 0
          %413 = vmatpush1.bf16.msra.mxu0 0
          %414 = vmatprep.subr.bf16.mxu0 0
          %415 = vmatpush1.bf16.msra.mxu0 0
          %416 = vmatprep.subr.bf16.mxu0 0
          %417 = vmatpush1.bf16.msra.mxu0 0
          %418 = vmatprep.subr.bf16.mxu0 0
          %419 = vmatpush1.bf16.msra.mxu0 0
          %420 = vmatprep.subr.bf16.mxu0 0
          %421 = vmatpush1.bf16.msra.mxu0 0
          %422 = vmatprep.subr.bf16.mxu0 0
          %423 = vmatpush1.bf16.msra.mxu0 0
          %424 = vmatprep.subr.bf16.mxu0 0
          %425 = vmatpush1.bf16.msra.mxu0 0
          %426 = vmatprep.subr.bf16.mxu0 0
          %427 = vmatpush1.bf16.msra.mxu0 0
          %428 = vmatprep.subr.bf16.mxu0 0
          %429 = vmatpush1.bf16.msra.mxu0 0
          %430 = vmatprep.subr.bf16.mxu0 0
          %431 = vmatpush1.bf16.msra.mxu0 0
          %432 = vmatprep.subr.bf16.mxu0 0
          %433 = vmatpush1.bf16.msra.mxu0 0
          %434 = vmatprep.subr.bf16.mxu0 0
          %435 = vmatpush1.bf16.msra.mxu0 0
          %436 = vmatprep.subr.bf16.mxu0 0
          %437 = vmatpush1.bf16.msra.mxu0 0
          %438 = vmatprep.mubr.bf16.mxu0 0
          %439 = vmatmul.mubr.bf16.gmra.mrb[0].mxu0 %v404
          %v440 = vpop.f32.mrb[0].mxu0
          %v441 = vadd.f32 0.0, %v440
          %v442 = vpop.f32.mrb[0].mxu0
          %v443 = vpop.f32.mrb[0].mxu0
          %v444 = vpop.f32.mrb[0].mxu0
          %445 = vdwg.mxu0
          %v446 = vpack.c.bf16 %v441, %v441
          %vm447 = vcmask 257024
          %448 = vst.msk [vmem:[#allocation2] sm:$0xf] %vm447, %v446
          %vm449 = vcmask 7168
          %450 = vst.msk [vmem:[#allocation3] sm:$0xff] %vm449, -1e+30
          %451 = vst.msk [vmem:[#allocation3 + $0x8] sm:$0xff] %vm449, -1e+30
          %452 = vst.msk [vmem:[#allocation3 + $0x10] sm:$0xff] %vm449, -1e+30
          %453 = vst.msk [vmem:[#allocation3 + $0x18] sm:$0xff] %vm449, -1e+30
          %454 = vst.msk [vmem:[#allocation4] sm:$0xff] %vm449, 0.0
          %455 = vst.msk [vmem:[#allocation4 + $0x8] sm:$0xff] %vm449, 0.0
          %456 = vst.msk [vmem:[#allocation4 + $0x10] sm:$0xff] %vm449, 0.0
          %457 = vst.msk [vmem:[#allocation4 + $0x18] sm:$0xff] %vm449, 0.0
          %vm458 = vcmask 64512
          %459 = vst.msk [vmem:[#allocation5] sm:$0xff] %vm458, 0.0
          %460 = vst.msk [vmem:[#allocation5 + $0x8] sm:$0xff] %vm458, 0.0
          %461 = vst.msk [vmem:[#allocation5 + $0x10] sm:$0xff] %vm458, 0.0
          %462 = vst.msk [vmem:[#allocation5 + $0x18] sm:$0xff] %vm458, 0.0
        $region60: #{tpu_custom_call.1} parent=39 // pred_fallthru
          _
        %p463 = scmp.lt.s32.totalorder %s30, %s29
        // Predicated region
        $region61: #{tpu_custom_call.1} parent=39 // pred_check
          %p464 = pneg %p463
        $region62: #{tpu_custom_call.1} parent=39 // pred_check_branch
          %466 = sbr.rel (%p464) target = $region64
        $region63: #{tpu_custom_call.1} parent=39 // pred_region
          %v467 = vld [vmem:[%s322] sm:$0xf]
          %v468 = vld [vmem:[%s377] sm:$0xf]
          %v469 = vld [vmem:[#allocation2] sm:$0xf]
          %vm470 = vcmask 64512
          %v472 = vsel %vm470, %v469, 0
          %v475 = vsel %vm470, %v467, 0
          %477 = vmatprep.subr.bf16.mxu0 0
          %478 = vmatpush1.bf16.xpose.msra.mxu0 %v475
          %479 = vmatprep.subr.bf16.mxu0 0
          %480 = vmatpush1.bf16.xpose.msra.mxu0 0
          %481 = vmatprep.subr.bf16.mxu0 0
          %482 = vmatpush1.bf16.xpose.msra.mxu0 0
          %483 = vmatprep.subr.bf16.mxu0 0
          %484 = vmatpush1.bf16.xpose.msra.mxu0 0
          %485 = vmatprep.subr.bf16.mxu0 0
          %486 = vmatpush1.bf16.xpose.msra.mxu0 0
          %487 = vmatprep.subr.bf16.mxu0 0
          %488 = vmatpush1.bf16.xpose.msra.mxu0 0
          %489 = vmatprep.subr.bf16.mxu0 0
          %490 = vmatpush1.bf16.xpose.msra.mxu0 0
          %491 = vmatprep.subr.bf16.mxu0 0
          %492 = vmatpush1.bf16.xpose.msra.mxu0 0
          %493 = vmatprep.subr.bf16.mxu0 0
          %494 = vmatpush1.bf16.xpose.msra.mxu0 0
          %495 = vmatprep.subr.bf16.mxu0 0
          %496 = vmatpush1.bf16.xpose.msra.mxu0 0
          %497 = vmatprep.subr.bf16.mxu0 0
          %498 = vmatpush1.bf16.xpose.msra.mxu0 0
          %499 = vmatprep.subr.bf16.mxu0 0
          %500 = vmatpush1.bf16.xpose.msra.mxu0 0
          %501 = vmatprep.subr.bf16.mxu0 0
          %502 = vmatpush1.bf16.xpose.msra.mxu0 0
          %503 = vmatprep.subr.bf16.mxu0 0
          %504 = vmatpush1.bf16.xpose.msra.mxu0 0
          %505 = vmatprep.subr.bf16.mxu0 0
          %506 = vmatpush1.bf16.xpose.msra.mxu0 0
          %507 = vmatprep.subr.bf16.mxu0 0
          %508 = vmatpush1.bf16.xpose.msra.mxu0 0
          %509 = vmatprep.mubr.bf16.mxu0 0
          %510 = vmatmul.mubr.bf16.gmra.mrb[0].mxu0 %v472
          %v511 = vpop.f32.mrb[0].mxu0
          %v512 = vadd.f32 0.0, %v511
          %v513 = vpop.f32.mrb[0].mxu0
          %v514 = vpop.f32.mrb[0].mxu0
          %v515 = vpop.f32.mrb[0].mxu0
          %516 = vdwg.mxu0
          %v517 = vld [vmem:[#allocation3] sm:$0xff]
          %v518 = vsel %vm470, %v512, -inf
          %519 = vmax.xlane.f32.xlu0 %v518
          %v520 = vpop.xlane.xlu0 %519
          %v521 = vmax.f32 %v517, %v520
          %v522 = vsub.f32 %v517, %v521
          %v523 = vmul.f32 %v522, 1.442695
          %v524 = vpow.pop %v523
          %526 = vset.pattern.permute.xlu0 0
          %527 = vperm.xlu0 %526, %v521
          %v528 = vpop.permute.xlu0 %527
          %v530 = vsub.f32 %v512, %v528
          %v531 = vmul.f32 %v530, 1.442695
          %v532 = vpow.pop %v531
          %v533 = vld [vmem:[#allocation4] sm:$0xff]
          %v534 = vmul.f32 %v524, %v533
          %v535 = vsel %vm470, %v532, 0.0
          %536 = vadd.xlane.f32.xlu0 %v535
          %v537 = vpop.xlane.xlu0 %536
          %v538 = vadd.f32 %v534, %v537
          %vm539 = vcmask 7168
          %540 = vst.msk [vmem:[#allocation4] sm:$0xff] %vm539, %v538
          %v541 = vld [vmem:[#allocation5] sm:$0xff]
          %543 = vset.pattern.permute.xlu0 0
          %544 = vperm.xlu0 %543, %v524
          %v545 = vpop.permute.xlu0 %544
          %v547 = vmul.f32 %v545, %v541
          %v548 = vpack.c.bf16 %v532, %v532
          %v550 = vsel %vm470, %v548, 0
          %vm552 = vcmask 1043456
          %v554 = vsel %vm552, %v468, 0
          %556 = vmatprep.subr.bf16.mxu0 0
          %557 = vmatpush1.bf16.msra.mxu0 %v554
          %558 = vmatprep.subr.bf16.mxu0 0
          %559 = vmatpush1.bf16.msra.mxu0 0
          %560 = vmatprep.subr.bf16.mxu0 0
          %561 = vmatpush1.bf16.msra.mxu0 0
          %562 = vmatprep.subr.bf16.mxu0 0
          %563 = vmatpush1.bf16.msra.mxu0 0
          %564 = vmatprep.subr.bf16.mxu0 0
          %565 = vmatpush1.bf16.msra.mxu0 0
          %566 = vmatprep.subr.bf16.mxu0 0
          %567 = vmatpush1.bf16.msra.mxu0 0
          %568 = vmatprep.subr.bf16.mxu0 0
          %569 = vmatpush1.bf16.msra.mxu0 0
          %570 = vmatprep.subr.bf16.mxu0 0
          %571 = vmatpush1.bf16.msra.mxu0 0
          %572 = vmatprep.subr.bf16.mxu0 0
          %573 = vmatpush1.bf16.msra.mxu0 0
          %574 = vmatprep.subr.bf16.mxu0 0
          %575 = vmatpush1.bf16.msra.mxu0 0
          %576 = vmatprep.subr.bf16.mxu0 0
          %577 = vmatpush1.bf16.msra.mxu0 0
          %578 = vmatprep.subr.bf16.mxu0 0
          %579 = vmatpush1.bf16.msra.mxu0 0
          %580 = vmatprep.subr.bf16.mxu0 0
          %581 = vmatpush1.bf16.msra.mxu0 0
          %582 = vmatprep.subr.bf16.mxu0 0
          %583 = vmatpush1.bf16.msra.mxu0 0
          %584 = vmatprep.subr.bf16.mxu0 0
          %585 = vmatpush1.bf16.msra.mxu0 0
          %586 = vmatprep.subr.bf16.mxu0 0
          %587 = vmatpush1.bf16.msra.mxu0 0
          %588 = vmatprep.mubr.bf16.mxu0 0
          %589 = vmatmul.mubr.bf16.gmra.mrb[0].mxu0 %v550
          %v590 = vpop.f32.mrb[0].mxu0
          %v591 = vadd.f32 0.0, %v590
          %v592 = vpop.f32.mrb[0].mxu0
          %v593 = vpop.f32.mrb[0].mxu0
          %v594 = vpop.f32.mrb[0].mxu0
          %595 = vdwg.mxu0
          %v596 = vadd.f32 %v547, %v591
          %597 = vst.msk [vmem:[#allocation5] sm:$0xff] %vm470, %v596
          %598 = vst.msk [vmem:[#allocation3] sm:$0xff] %vm539, %v521
          %v599 = vld [vmem:[#allocation2] sm:$0xf]
          %v601 = vunpack.c.l.b16 %v599
          %v602 = vpack.c.b16 %v601, %v601
          %603 = vrot.lane.b32.xlu0 %v602, 120
          %v604 = vpop.permute.xlu0 %603
          %v606 = vunpack.c.l.b16 %v467
          %v607 = vpack.c.b16 %v606, %v606
          %608 = vrot.lane.b32.xlu0 %v607, 120
          %v609 = vpop.permute.xlu0 %608
          %v611 = vsel %vm470, %v604, 0
          %v614 = vsel %vm470, %v609, 0
          %616 = vmatprep.subr.bf16.mxu0 0
          %617 = vmatpush1.bf16.xpose.msra.mxu0 %v614
          %618 = vmatprep.subr.bf16.mxu0 0
          %619 = vmatpush1.bf16.xpose.msra.mxu0 0
          %620 = vmatprep.subr.bf16.mxu0 0
          %621 = vmatpush1.bf16.xpose.msra.mxu0 0
          %622 = vmatprep.subr.bf16.mxu0 0
          %623 = vmatpush1.bf16.xpose.msra.mxu0 0
          %624 = vmatprep.subr.bf16.mxu0 0
          %625 = vmatpush1.bf16.xpose.msra.mxu0 0
          %626 = vmatprep.subr.bf16.mxu0 0
          %627 = vmatpush1.bf16.xpose.msra.mxu0 0
          %628 = vmatprep.subr.bf16.mxu0 0
          %629 = vmatpush1.bf16.xpose.msra.mxu0 0
          %630 = vmatprep.subr.bf16.mxu0 0
          %631 = vmatpush1.bf16.xpose.msra.mxu0 0
          %632 = vmatprep.subr.bf16.mxu0 0
          %633 = vmatpush1.bf16.xpose.msra.mxu0 0
          %634 = vmatprep.subr.bf16.mxu0 0
          %635 = vmatpush1.bf16.xpose.msra.mxu0 0
          %636 = vmatprep.subr.bf16.mxu0 0
          %637 = vmatpush1.bf16.xpose.msra.mxu0 0
          %638 = vmatprep.subr.bf16.mxu0 0
          %639 = vmatpush1.bf16.xpose.msra.mxu0 0
          %640 = vmatprep.subr.bf16.mxu0 0
          %641 = vmatpush1.bf16.xpose.msra.mxu0 0
          %642 = vmatprep.subr.bf16.mxu0 0
          %643 = vmatpush1.bf16.xpose.msra.mxu0 0
          %644 = vmatprep.subr.bf16.mxu0 0
          %645 = vmatpush1.bf16.xpose.msra.mxu0 0
          %646 = vmatprep.subr.bf16.mxu0 0
          %647 = vmatpush1.bf16.xpose.msra.mxu0 0
          %648 = vmatprep.mubr.bf16.mxu0 0
          %649 = vmatmul.mubr.bf16.gmra.mrb[0].mxu0 %v611
          %v650 = vpop.f32.mrb[0].mxu0
          %v651 = vadd.f32 0.0, %v650
          %v652 = vpop.f32.mrb[0].mxu0
          %v653 = vpop.f32.mrb[0].mxu0
          %v654 = vpop.f32.mrb[0].mxu0
          %655 = vdwg.mxu0
          %s656 = scalar_lea.vmem [#allocation3], 8
          %v657 = vld [vmem:[%s656] sm:$0xff]
          %v658 = vsel %vm470, %v651, -inf
          %659 = vmax.xlane.f32.xlu0 %v658
          %v660 = vpop.xlane.xlu0 %659
          %v661 = vmax.f32 %v657, %v660
          %v662 = vsub.f32 %v657, %v661
          %v663 = vmul.f32 %v662, 1.442695
          %v664 = vpow.pop %v663
          %666 = vset.pattern.permute.xlu0 0
          %667 = vperm.xlu0 %666, %v661
          %v668 = vpop.permute.xlu0 %667
          %v670 = vsub.f32 %v651, %v668
          %v671 = vmul.f32 %v670, 1.442695
          %v672 = vpow.pop %v671
          %s673 = scalar_lea.vmem [#allocation4], 8
          %v674 = vld [vmem:[%s673] sm:$0xff]
          %v675 = vmul.f32 %v664, %v674
          %v676 = vsel %vm470, %v672, 0.0
          %677 = vadd.xlane.f32.xlu0 %v676
          %v678 = vpop.xlane.xlu0 %677
          %v679 = vadd.f32 %v675, %v678
          %680 = vst.msk [vmem:[%s673] sm:$0xff] %vm539, %v679
          %s681 = scalar_lea.vmem [#allocation5], 8
          %v682 = vld [vmem:[%s681] sm:$0xff]
          %684 = vset.pattern.permute.xlu0 0
          %685 = vperm.xlu0 %684, %v664
          %v686 = vpop.permute.xlu0 %685
          %v688 = vmul.f32 %v686, %v682
          %v689 = vpack.c.bf16 %v672, %v672
          %v691 = vunpack.c.l.b16 %v468
          %v692 = vpack.c.b16 %v691, %v691
          %693 = vrot.lane.b32.xlu0 %v692, 120
          %v694 = vpop.permute.xlu0 %693
          %v696 = vsel %vm470, %v689, 0
          %v699 = vsel %vm552, %v694, 0
          %701 = vmatprep.subr.bf16.mxu0 0
          %702 = vmatpush1.bf16.msra.mxu0 %v699
          %703 = vmatprep.subr.bf16.mxu0 0
          %704 = vmatpush1.bf16.msra.mxu0 0
          %705 = vmatprep.subr.bf16.mxu0 0
          %706 = vmatpush1.bf16.msra.mxu0 0
          %707 = vmatprep.subr.bf16.mxu0 0
          %708 = vmatpush1.bf16.msra.mxu0 0
          %709 = vmatprep.subr.bf16.mxu0 0
          %710 = vmatpush1.bf16.msra.mxu0 0
          %711 = vmatprep.subr.bf16.mxu0 0
          %712 = vmatpush1.bf16.msra.mxu0 0
          %713 = vmatprep.subr.bf16.mxu0 0
          %714 = vmatpush1.bf16.msra.mxu0 0
          %715 = vmatprep.subr.bf16.mxu0 0
          %716 = vmatpush1.bf16.msra.mxu0 0
          %717 = vmatprep.subr.bf16.mxu0 0
          %718 = vmatpush1.bf16.msra.mxu0 0
          %719 = vmatprep.subr.bf16.mxu0 0
          %720 = vmatpush1.bf16.msra.mxu0 0
          %721 = vmatprep.subr.bf16.mxu0 0
          %722 = vmatpush1.bf16.msra.mxu0 0
          %723 = vmatprep.subr.bf16.mxu0 0
          %724 = vmatpush1.bf16.msra.mxu0 0
          %725 = vmatprep.subr.bf16.mxu0 0
          %726 = vmatpush1.bf16.msra.mxu0 0
          %727 = vmatprep.subr.bf16.mxu0 0
          %728 = vmatpush1.bf16.msra.mxu0 0
          %729 = vmatprep.subr.bf16.mxu0 0
          %730 = vmatpush1.bf16.msra.mxu0 0
          %731 = vmatprep.subr.bf16.mxu0 0
          %732 = vmatpush1.bf16.msra.mxu0 0
          %733 = vmatprep.mubr.bf16.mxu0 0
          %734 = vmatmul.mubr.bf16.gmra.mrb[0].mxu0 %v696
          %v735 = vpop.f32.mrb[0].mxu0
          %v736 = vadd.f32 0.0, %v735
          %v737 = vpop.f32.mrb[0].mxu0
          %v738 = vpop.f32.mrb[0].mxu0
          %v739 = vpop.f32.mrb[0].mxu0
          %740 = vdwg.mxu0
          %v741 = vadd.f32 %v688, %v736
          %742 = vst.msk [vmem:[%s681] sm:$0xff] %vm470, %v741
          %743 = vst.msk [vmem:[%s656] sm:$0xff] %vm539, %v661
          %v744 = vld [vmem:[#allocation2] sm:$0xf]
          %v746 = vunpack.c.l.b16 %v744
          %v747 = vpack.c.b16 %v746, %v746
          %748 = vrot.lane.b32.xlu0 %v747, 112
          %v749 = vpop.permute.xlu0 %748
          %750 = vrot.lane.b32.xlu0 %v607, 112
          %v751 = vpop.permute.xlu0 %750
          %v753 = vsel %vm470, %v749, 0
          %v756 = vsel %vm470, %v751, 0
          %758 = vmatprep.subr.bf16.mxu0 0
          %759 = vmatpush1.bf16.xpose.msra.mxu0 %v756
          %760 = vmatprep.subr.bf16.mxu0 0
          %761 = vmatpush1.bf16.xpose.msra.mxu0 0
          %762 = vmatprep.subr.bf16.mxu0 0
          %763 = vmatpush1.bf16.xpose.msra.mxu0 0
          %764 = vmatprep.subr.bf16.mxu0 0
          %765 = vmatpush1.bf16.xpose.msra.mxu0 0
          %766 = vmatprep.subr.bf16.mxu0 0
          %767 = vmatpush1.bf16.xpose.msra.mxu0 0
          %768 = vmatprep.subr.bf16.mxu0 0
          %769 = vmatpush1.bf16.xpose.msra.mxu0 0
          %770 = vmatprep.subr.bf16.mxu0 0
          %771 = vmatpush1.bf16.xpose.msra.mxu0 0
          %772 = vmatprep.subr.bf16.mxu0 0
          %773 = vmatpush1.bf16.xpose.msra.mxu0 0
          %774 = vmatprep.subr.bf16.mxu0 0
          %775 = vmatpush1.bf16.xpose.msra.mxu0 0
          %776 = vmatprep.subr.bf16.mxu0 0
          %777 = vmatpush1.bf16.xpose.msra.mxu0 0
          %778 = vmatprep.subr.bf16.mxu0 0
          %779 = vmatpush1.bf16.xpose.msra.mxu0 0
          %780 = vmatprep.subr.bf16.mxu0 0
          %781 = vmatpush1.bf16.xpose.msra.mxu0 0
          %782 = vmatprep.subr.bf16.mxu0 0
          %783 = vmatpush1.bf16.xpose.msra.mxu0 0
          %784 = vmatprep.subr.bf16.mxu0 0
          %785 = vmatpush1.bf16.xpose.msra.mxu0 0
          %786 = vmatprep.subr.bf16.mxu0 0
          %787 = vmatpush1.bf16.xpose.msra.mxu0 0
          %788 = vmatprep.subr.bf16.mxu0 0
          %789 = vmatpush1.bf16.xpose.msra.mxu0 0
          %790 = vmatprep.mubr.bf16.mxu0 0
          %791 = vmatmul.mubr.bf16.gmra.mrb[0].mxu0 %v753
          %v792 = vpop.f32.mrb[0].mxu0
          %v793 = vadd.f32 0.0, %v792
          %v794 = vpop.f32.mrb[0].mxu0
          %v795 = vpop.f32.mrb[0].mxu0
          %v796 = vpop.f32.mrb[0].mxu0
          %797 = vdwg.mxu0
          %s798 = scalar_lea.vmem [#allocation3], 16
          %v799 = vld [vmem:[%s798] sm:$0xff]
          %v800 = vsel %vm470, %v793, -inf
          %801 = vmax.xlane.f32.xlu0 %v800
          %v802 = vpop.xlane.xlu0 %801
          %v803 = vmax.f32 %v799, %v802
          %v804 = vsub.f32 %v799, %v803
          %v805 = vmul.f32 %v804, 1.442695
          %v806 = vpow.pop %v805
          %808 = vset.pattern.permute.xlu0 0
          %809 = vperm.xlu0 %808, %v803
          %v810 = vpop.permute.xlu0 %809
          %v812 = vsub.f32 %v793, %v810
          %v813 = vmul.f32 %v812, 1.442695
          %v814 = vpow.pop %v813
          %s815 = scalar_lea.vmem [#allocation4], 16
          %v816 = vld [vmem:[%s815] sm:$0xff]
          %v817 = vmul.f32 %v806, %v816
          %v818 = vsel %vm470, %v814, 0.0
          %819 = vadd.xlane.f32.xlu0 %v818
          %v820 = vpop.xlane.xlu0 %819
          %v821 = vadd.f32 %v817, %v820
          %822 = vst.msk [vmem:[%s815] sm:$0xff] %vm539, %v821
          %s823 = scalar_lea.vmem [#allocation5], 16
          %v824 = vld [vmem:[%s823] sm:$0xff]
          %826 = vset.pattern.permute.xlu0 0
          %827 = vperm.xlu0 %826, %v806
          %v828 = vpop.permute.xlu0 %827
          %v830 = vmul.f32 %v828, %v824
          %v831 = vpack.c.bf16 %v814, %v814
          %832 = vrot.lane.b32.xlu0 %v692, 112
          %v833 = vpop.permute.xlu0 %832
          %v835 = vsel %vm470, %v831, 0
          %v838 = vsel %vm552, %v833, 0
          %840 = vmatprep.subr.bf16.mxu0 0
          %841 = vmatpush1.bf16.msra.mxu0 %v838
          %842 = vmatprep.subr.bf16.mxu0 0
          %843 = vmatpush1.bf16.msra.mxu0 0
          %844 = vmatprep.subr.bf16.mxu0 0
          %845 = vmatpush1.bf16.msra.mxu0 0
          %846 = vmatprep.subr.bf16.mxu0 0
          %847 = vmatpush1.bf16.msra.mxu0 0
          %848 = vmatprep.subr.bf16.mxu0 0
          %849 = vmatpush1.bf16.msra.mxu0 0
          %850 = vmatprep.subr.bf16.mxu0 0
          %851 = vmatpush1.bf16.msra.mxu0 0
          %852 = vmatprep.subr.bf16.mxu0 0
          %853 = vmatpush1.bf16.msra.mxu0 0
          %854 = vmatprep.subr.bf16.mxu0 0
          %855 = vmatpush1.bf16.msra.mxu0 0
          %856 = vmatprep.subr.bf16.mxu0 0
          %857 = vmatpush1.bf16.msra.mxu0 0
          %858 = vmatprep.subr.bf16.mxu0 0
          %859 = vmatpush1.bf16.msra.mxu0 0
          %860 = vmatprep.subr.bf16.mxu0 0
          %861 = vmatpush1.bf16.msra.mxu0 0
          %862 = vmatprep.subr.bf16.mxu0 0
          %863 = vmatpush1.bf16.msra.mxu0 0
          %864 = vmatprep.subr.bf16.mxu0 0
          %865 = vmatpush1.bf16.msra.mxu0 0
          %866 = vmatprep.subr.bf16.mxu0 0
          %867 = vmatpush1.bf16.msra.mxu0 0
          %868 = vmatprep.subr.bf16.mxu0 0
          %869 = vmatpush1.bf16.msra.mxu0 0
          %870 = vmatprep.subr.bf16.mxu0 0
          %871 = vmatpush1.bf16.msra.mxu0 0
          %872 = vmatprep.mubr.bf16.mxu0 0
          %873 = vmatmul.mubr.bf16.gmra.mrb[0].mxu0 %v835
          %v874 = vpop.f32.mrb[0].mxu0
          %v875 = vadd.f32 0.0, %v874
          %v876 = vpop.f32.mrb[0].mxu0
          %v877 = vpop.f32.mrb[0].mxu0
          %v878 = vpop.f32.mrb[0].mxu0
          %879 = vdwg.mxu0
          %v880 = vadd.f32 %v830, %v875
          %881 = vst.msk [vmem:[%s823] sm:$0xff] %vm470, %v880
          %882 = vst.msk [vmem:[%s798] sm:$0xff] %vm539, %v803
          %v883 = vld [vmem:[#allocation2] sm:$0xf]
          %v885 = vunpack.c.l.b16 %v883
          %v886 = vpack.c.b16 %v885, %v885
          %887 = vrot.lane.b32.xlu0 %v886, 104
          %v888 = vpop.permute.xlu0 %887
          %889 = vrot.lane.b32.xlu0 %v607, 104
          %v890 = vpop.permute.xlu0 %889
          %v892 = vsel %vm470, %v888, 0
          %v895 = vsel %vm470, %v890, 0
          %897 = vmatprep.subr.bf16.mxu0 0
          %898 = vmatpush1.bf16.xpose.msra.mxu0 %v895
          %899 = vmatprep.subr.bf16.mxu0 0
          %900 = vmatpush1.bf16.xpose.msra.mxu0 0
          %901 = vmatprep.subr.bf16.mxu0 0
          %902 = vmatpush1.bf16.xpose.msra.mxu0 0
          %903 = vmatprep.subr.bf16.mxu0 0
          %904 = vmatpush1.bf16.xpose.msra.mxu0 0
          %905 = vmatprep.subr.bf16.mxu0 0
          %906 = vmatpush1.bf16.xpose.msra.mxu0 0
          %907 = vmatprep.subr.bf16.mxu0 0
          %908 = vmatpush1.bf16.xpose.msra.mxu0 0
          %909 = vmatprep.subr.bf16.mxu0 0
          %910 = vmatpush1.bf16.xpose.msra.mxu0 0
          %911 = vmatprep.subr.bf16.mxu0 0
          %912 = vmatpush1.bf16.xpose.msra.mxu0 0
          %913 = vmatprep.subr.bf16.mxu0 0
          %914 = vmatpush1.bf16.xpose.msra.mxu0 0
          %915 = vmatprep.subr.bf16.mxu0 0
          %916 = vmatpush1.bf16.xpose.msra.mxu0 0
          %917 = vmatprep.subr.bf16.mxu0 0
          %918 = vmatpush1.bf16.xpose.msra.mxu0 0
          %919 = vmatprep.subr.bf16.mxu0 0
          %920 = vmatpush1.bf16.xpose.msra.mxu0 0
          %921 = vmatprep.subr.bf16.mxu0 0
          %922 = vmatpush1.bf16.xpose.msra.mxu0 0
          %923 = vmatprep.subr.bf16.mxu0 0
          %924 = vmatpush1.bf16.xpose.msra.mxu0 0
          %925 = vmatprep.subr.bf16.mxu0 0
          %926 = vmatpush1.bf16.xpose.msra.mxu0 0
          %927 = vmatprep.subr.bf16.mxu0 0
          %928 = vmatpush1.bf16.xpose.msra.mxu0 0
          %929 = vmatprep.mubr.bf16.mxu0 0
          %930 = vmatmul.mubr.bf16.gmra.mrb[0].mxu0 %v892
          %v931 = vpop.f32.mrb[0].mxu0
          %v932 = vadd.f32 0.0, %v931
          %v933 = vpop.f32.mrb[0].mxu0
          %v934 = vpop.f32.mrb[0].mxu0
          %v935 = vpop.f32.mrb[0].mxu0
          %936 = vdwg.mxu0
          %s937 = scalar_lea.vmem [#allocation3], 24
          %v938 = vld [vmem:[%s937] sm:$0xff]
          %v939 = vsel %vm470, %v932, -inf
          %940 = vmax.xlane.f32.xlu0 %v939
          %v941 = vpop.xlane.xlu0 %940
          %v942 = vmax.f32 %v938, %v941
          %v943 = vsub.f32 %v938, %v942
          %v944 = vmul.f32 %v943, 1.442695
          %v945 = vpow.pop %v944
          %947 = vset.pattern.permute.xlu0 0
          %948 = vperm.xlu0 %947, %v942
          %v949 = vpop.permute.xlu0 %948
          %v951 = vsub.f32 %v932, %v949
          %v952 = vmul.f32 %v951, 1.442695
          %v953 = vpow.pop %v952
          %s954 = scalar_lea.vmem [#allocation4], 24
          %v955 = vld [vmem:[%s954] sm:$0xff]
          %v956 = vmul.f32 %v945, %v955
          %v957 = vsel %vm470, %v953, 0.0
          %958 = vadd.xlane.f32.xlu0 %v957
          %v959 = vpop.xlane.xlu0 %958
          %v960 = vadd.f32 %v956, %v959
          %961 = vst.msk [vmem:[%s954] sm:$0xff] %vm539, %v960
          %s962 = scalar_lea.vmem [#allocation5], 24
          %v963 = vld [vmem:[%s962] sm:$0xff]
          %965 = vset.pattern.permute.xlu0 0
          %966 = vperm.xlu0 %965, %v945
          %v967 = vpop.permute.xlu0 %966
          %v969 = vmul.f32 %v967, %v963
          %v970 = vpack.c.bf16 %v953, %v953
          %971 = vrot.lane.b32.xlu0 %v692, 104
          %v972 = vpop.permute.xlu0 %971
          %v974 = vsel %vm470, %v970, 0
          %v977 = vsel %vm552, %v972, 0
          %979 = vmatprep.subr.bf16.mxu0 0
          %980 = vmatpush1.bf16.msra.mxu0 %v977
          %981 = vmatprep.subr.bf16.mxu0 0
          %982 = vmatpush1.bf16.msra.mxu0 0
          %983 = vmatprep.subr.bf16.mxu0 0
          %984 = vmatpush1.bf16.msra.mxu0 0
          %985 = vmatprep.subr.bf16.mxu0 0
          %986 = vmatpush1.bf16.msra.mxu0 0
          %987 = vmatprep.subr.bf16.mxu0 0
          %988 = vmatpush1.bf16.msra.mxu0 0
          %989 = vmatprep.subr.bf16.mxu0 0
          %990 = vmatpush1.bf16.msra.mxu0 0
          %991 = vmatprep.subr.bf16.mxu0 0
          %992 = vmatpush1.bf16.msra.mxu0 0
          %993 = vmatprep.subr.bf16.mxu0 0
          %994 = vmatpush1.bf16.msra.mxu0 0
          %995 = vmatprep.subr.bf16.mxu0 0
          %996 = vmatpush1.bf16.msra.mxu0 0
          %997 = vmatprep.subr.bf16.mxu0 0
          %998 = vmatpush1.bf16.msra.mxu0 0
          %999 = vmatprep.subr.bf16.mxu0 0
          %1000 = vmatpush1.bf16.msra.mxu0 0
          %1001 = vmatprep.subr.bf16.mxu0 0
          %1002 = vmatpush1.bf16.msra.mxu0 0
          %1003 = vmatprep.subr.bf16.mxu0 0
          %1004 = vmatpush1.bf16.msra.mxu0 0
          %1005 = vmatprep.subr.bf16.mxu0 0
          %1006 = vmatpush1.bf16.msra.mxu0 0
          %1007 = vmatprep.subr.bf16.mxu0 0
          %1008 = vmatpush1.bf16.msra.mxu0 0
          %1009 = vmatprep.subr.bf16.mxu0 0
          %1010 = vmatpush1.bf16.msra.mxu0 0
          %1011 = vmatprep.mubr.bf16.mxu0 0
          %1012 = vmatmul.mubr.bf16.gmra.mrb[0].mxu0 %v974
          %v1013 = vpop.f32.mrb[0].mxu0
          %v1014 = vadd.f32 0.0, %v1013
          %v1015 = vpop.f32.mrb[0].mxu0
          %v1016 = vpop.f32.mrb[0].mxu0
          %v1017 = vpop.f32.mrb[0].mxu0
          %1018 = vdwg.mxu0
          %v1019 = vadd.f32 %v969, %v1014
          %1020 = vst.msk [vmem:[%s962] sm:$0xff] %vm470, %v1019
          %1021 = vst.msk [vmem:[%s937] sm:$0xff] %vm539, %v942
        $region64: #{tpu_custom_call.1} parent=39 // pred_fallthru
          _
        %p1022 = scmp.eq.s32.totalorder %s30, %s29
        // Predicated region
        $region65: #{tpu_custom_call.1} parent=39 // pred_check
          %p1023 = pneg %p1022
        $region66: #{tpu_custom_call.1} parent=39 // pred_check_branch
          %1025 = sbr.rel (%p1023) target = $region68
        $region67: #{tpu_custom_call.1} parent=39 // pred_region
          %v1026 = vld [vmem:[%s322] sm:$0xf]
          %v1027 = vld [vmem:[%s377] sm:$0xf]
          %v1028 = vlaneseq
          %v1029 = vshrl.u32 %v1028, 7
          %v1030 = vlaneseq
          %v1031 = vand.u32 %v1030, 127
          %vm1032 = vcmp.ge.s32.totalorder %v1029, %v1031
          %v1033 = vsel %vm1032, 0.0, -1e+30
          %v1034 = vld [vmem:[#allocation2] sm:$0xf]
          %vm1035 = vcmask 64512
          %v1037 = vsel %vm1035, %v1034, 0
          %v1040 = vsel %vm1035, %v1026, 0
          %1042 = vmatprep.subr.bf16.mxu0 0
          %1043 = vmatpush1.bf16.xpose.msra.mxu0 %v1040
          %1044 = vmatprep.subr.bf16.mxu0 0
          %1045 = vmatpush1.bf16.xpose.msra.mxu0 0
          %1046 = vmatprep.subr.bf16.mxu0 0
          %1047 = vmatpush1.bf16.xpose.msra.mxu0 0
          %1048 = vmatprep.subr.bf16.mxu0 0
          %1049 = vmatpush1.bf16.xpose.msra.mxu0 0
          %1050 = vmatprep.subr.bf16.mxu0 0
          %1051 = vmatpush1.bf16.xpose.msra.mxu0 0
          %1052 = vmatprep.subr.bf16.mxu0 0
          %1053 = vmatpush1.bf16.xpose.msra.mxu0 0
          %1054 = vmatprep.subr.bf16.mxu0 0
          %1055 = vmatpush1.bf16.xpose.msra.mxu0 0
          %1056 = vmatprep.subr.bf16.mxu0 0
          %1057 = vmatpush1.bf16.xpose.msra.mxu0 0
          %1058 = vmatprep.subr.bf16.mxu0 0
          %1059 = vmatpush1.bf16.xpose.msra.mxu0 0
          %1060 = vmatprep.subr.bf16.mxu0 0
          %1061 = vmatpush1.bf16.xpose.msra.mxu0 0
          %1062 = vmatprep.subr.bf16.mxu0 0
          %1063 = vmatpush1.bf16.xpose.msra.mxu0 0
          %1064 = vmatprep.subr.bf16.mxu0 0
          %1065 = vmatpush1.bf16.xpose.msra.mxu0 0
          %1066 = vmatprep.subr.bf16.mxu0 0
          %1067 = vmatpush1.bf16.xpose.msra.mxu0 0
          %1068 = vmatprep.subr.bf16.mxu0 0
          %1069 = vmatpush1.bf16.xpose.msra.mxu0 0
          %1070 = vmatprep.subr.bf16.mxu0 0
          %1071 = vmatpush1.bf16.xpose.msra.mxu0 0
          %1072 = vmatprep.subr.bf16.mxu0 0
          %1073 = vmatpush1.bf16.xpose.msra.mxu0 0
          %1074 = vmatprep.mubr.bf16.mxu0 0
          %1075 = vmatmul.mubr.bf16.gmra.mrb[0].mxu0 %v1037
          %v1076 = vpop.f32.mrb[0].mxu0
          %v1077 = vadd.f32 %v1033, %v1076
          %v1078 = vpop.f32.mrb[0].mxu0
          %v1079 = vpop.f32.mrb[0].mxu0
          %v1080 = vpop.f32.mrb[0].mxu0
          %1081 = vdwg.mxu0
          %v1082 = vld [vmem:[#allocation3] sm:$0xff]
          %v1083 = vsel %vm1035, %v1077, -inf
          %1084 = vmax.xlane.f32.xlu0 %v1083
          %v1085 = vpop.xlane.xlu0 %1084
          %v1086 = vmax.f32 %v1082, %v1085
          %v1087 = vsub.f32 %v1082, %v1086
          %v1088 = vmul.f32 %v1087, 1.442695
          %v1089 = vpow.pop %v1088
          %1091 = vset.pattern.permute.xlu0 0
          %1092 = vperm.xlu0 %1091, %v1086
          %v1093 = vpop.permute.xlu0 %1092
          %v1095 = vsub.f32 %v1077, %v1093
          %v1096 = vmul.f32 %v1095, 1.442695
          %v1097 = vpow.pop %v1096
          %v1098 = vld [vmem:[#allocation4] sm:$0xff]
          %v1099 = vmul.f32 %v1089, %v1098
          %v1100 = vsel %vm1035, %v1097, 0.0
          %1101 = vadd.xlane.f32.xlu0 %v1100
          %v1102 = vpop.xlane.xlu0 %1101
          %v1103 = vadd.f32 %v1099, %v1102
          %vm1104 = vcmask 7168
          %1105 = vst.msk [vmem:[#allocation4] sm:$0xff] %vm1104, %v1103
          %v1106 = vld [vmem:[#allocation5] sm:$0xff]
          %1108 = vset.pattern.permute.xlu0 0
          %1109 = vperm.xlu0 %1108, %v1089
          %v1110 = vpop.permute.xlu0 %1109
          %v1112 = vmul.f32 %v1110, %v1106
          %v1113 = vpack.c.bf16 %v1097, %v1097
          %v1115 = vsel %vm1035, %v1113, 0
          %vm1117 = vcmask 1043456
          %v1119 = vsel %vm1117, %v1027, 0
          %1121 = vmatprep.subr.bf16.mxu0 0
          %1122 = vmatpush1.bf16.msra.mxu0 %v1119
          %1123 = vmatprep.subr.bf16.mxu0 0
          %1124 = vmatpush1.bf16.msra.mxu0 0
          %1125 = vmatprep.subr.bf16.mxu0 0
          %1126 = vmatpush1.bf16.msra.mxu0 0
          %1127 = vmatprep.subr.bf16.mxu0 0
          %1128 = vmatpush1.bf16.msra.mxu0 0
          %1129 = vmatprep.subr.bf16.mxu0 0
          %1130 = vmatpush1.bf16.msra.mxu0 0
          %1131 = vmatprep.subr.bf16.mxu0 0
          %1132 = vmatpush1.bf16.msra.mxu0 0
          %1133 = vmatprep.subr.bf16.mxu0 0
          %1134 = vmatpush1.bf16.msra.mxu0 0
          %1135 = vmatprep.subr.bf16.mxu0 0
          %1136 = vmatpush1.bf16.msra.mxu0 0
          %1137 = vmatprep.subr.bf16.mxu0 0
          %1138 = vmatpush1.bf16.msra.mxu0 0
          %1139 = vmatprep.subr.bf16.mxu0 0
          %1140 = vmatpush1.bf16.msra.mxu0 0
          %1141 = vmatprep.subr.bf16.mxu0 0
          %1142 = vmatpush1.bf16.msra.mxu0 0
          %1143 = vmatprep.subr.bf16.mxu0 0
          %1144 = vmatpush1.bf16.msra.mxu0 0
          %1145 = vmatprep.subr.bf16.mxu0 0
          %1146 = vmatpush1.bf16.msra.mxu0 0
          %1147 = vmatprep.subr.bf16.mxu0 0
          %1148 = vmatpush1.bf16.msra.mxu0 0
          %1149 = vmatprep.subr.bf16.mxu0 0
          %1150 = vmatpush1.bf16.msra.mxu0 0
          %1151 = vmatprep.subr.bf16.mxu0 0
          %1152 = vmatpush1.bf16.msra.mxu0 0
          %1153 = vmatprep.mubr.bf16.mxu0 0
          %1154 = vmatmul.mubr.bf16.gmra.mrb[0].mxu0 %v1115
          %v1155 = vpop.f32.mrb[0].mxu0
          %v1156 = vadd.f32 0.0, %v1155
          %v1157 = vpop.f32.mrb[0].mxu0
          %v1158 = vpop.f32.mrb[0].mxu0
          %v1159 = vpop.f32.mrb[0].mxu0
          %1160 = vdwg.mxu0
          %v1161 = vadd.f32 %v1112, %v1156
          %1162 = vst.msk [vmem:[#allocation5] sm:$0xff] %vm1035, %v1161
          %1163 = vst.msk [vmem:[#allocation3] sm:$0xff] %vm1104, %v1086
          %v1164 = vld [vmem:[#allocation2] sm:$0xf]
          %v1166 = vunpack.c.l.b16 %v1164
          %v1167 = vpack.c.b16 %v1166, %v1166
          %1168 = vrot.lane.b32.xlu0 %v1167, 120
          %v1169 = vpop.permute.xlu0 %1168
          %v1171 = vunpack.c.l.b16 %v1026
          %v1172 = vpack.c.b16 %v1171, %v1171
          %1173 = vrot.lane.b32.xlu0 %v1172, 120
          %v1174 = vpop.permute.xlu0 %1173
          %v1176 = vsel %vm1035, %v1169, 0
          %v1179 = vsel %vm1035, %v1174, 0
          %1181 = vmatprep.subr.bf16.mxu0 0
          %1182 = vmatpush1.bf16.xpose.msra.mxu0 %v1179
          %1183 = vmatprep.subr.bf16.mxu0 0
          %1184 = vmatpush1.bf16.xpose.msra.mxu0 0
          %1185 = vmatprep.subr.bf16.mxu0 0
          %1186 = vmatpush1.bf16.xpose.msra.mxu0 0
          %1187 = vmatprep.subr.bf16.mxu0 0
          %1188 = vmatpush1.bf16.xpose.msra.mxu0 0
          %1189 = vmatprep.subr.bf16.mxu0 0
          %1190 = vmatpush1.bf16.xpose.msra.mxu0 0
          %1191 = vmatprep.subr.bf16.mxu0 0
          %1192 = vmatpush1.bf16.xpose.msra.mxu0 0
          %1193 = vmatprep.subr.bf16.mxu0 0
          %1194 = vmatpush1.bf16.xpose.msra.mxu0 0
          %1195 = vmatprep.subr.bf16.mxu0 0
          %1196 = vmatpush1.bf16.xpose.msra.mxu0 0
          %1197 = vmatprep.subr.bf16.mxu0 0
          %1198 = vmatpush1.bf16.xpose.msra.mxu0 0
          %1199 = vmatprep.subr.bf16.mxu0 0
          %1200 = vmatpush1.bf16.xpose.msra.mxu0 0
          %1201 = vmatprep.subr.bf16.mxu0 0
          %1202 = vmatpush1.bf16.xpose.msra.mxu0 0
          %1203 = vmatprep.subr.bf16.mxu0 0
          %1204 = vmatpush1.bf16.xpose.msra.mxu0 0
          %1205 = vmatprep.subr.bf16.mxu0 0
          %1206 = vmatpush1.bf16.xpose.msra.mxu0 0
          %1207 = vmatprep.subr.bf16.mxu0 0
          %1208 = vmatpush1.bf16.xpose.msra.mxu0 0
          %1209 = vmatprep.subr.bf16.mxu0 0
          %1210 = vmatpush1.bf16.xpose.msra.mxu0 0
          %1211 = vmatprep.subr.bf16.mxu0 0
          %1212 = vmatpush1.bf16.xpose.msra.mxu0 0
          %1213 = vmatprep.mubr.bf16.mxu0 0
          %1214 = vmatmul.mubr.bf16.gmra.mrb[0].mxu0 %v1176
          %v1215 = vpop.f32.mrb[0].mxu0
          %v1216 = vadd.f32 %v1033, %v1215
          %v1217 = vpop.f32.mrb[0].mxu0
          %v1218 = vpop.f32.mrb[0].mxu0
          %v1219 = vpop.f32.mrb[0].mxu0
          %1220 = vdwg.mxu0
          %s1221 = scalar_lea.vmem [#allocation3], 8
          %v1222 = vld [vmem:[%s1221] sm:$0xff]
          %v1223 = vsel %vm1035, %v1216, -inf
          %1224 = vmax.xlane.f32.xlu0 %v1223
          %v1225 = vpop.xlane.xlu0 %1224
          %v1226 = vmax.f32 %v1222, %v1225
          %v1227 = vsub.f32 %v1222, %v1226
          %v1228 = vmul.f32 %v1227, 1.442695
          %v1229 = vpow.pop %v1228
          %1231 = vset.pattern.permute.xlu0 0
          %1232 = vperm.xlu0 %1231, %v1226
          %v1233 = vpop.permute.xlu0 %1232
          %v1235 = vsub.f32 %v1216, %v1233
          %v1236 = vmul.f32 %v1235, 1.442695
          %v1237 = vpow.pop %v1236
          %s1238 = scalar_lea.vmem [#allocation4], 8
          %v1239 = vld [vmem:[%s1238] sm:$0xff]
          %v1240 = vmul.f32 %v1229, %v1239
          %v1241 = vsel %vm1035, %v1237, 0.0
          %1242 = vadd.xlane.f32.xlu0 %v1241
          %v1243 = vpop.xlane.xlu0 %1242
          %v1244 = vadd.f32 %v1240, %v1243
          %1245 = vst.msk [vmem:[%s1238] sm:$0xff] %vm1104, %v1244
          %s1246 = scalar_lea.vmem [#allocation5], 8
          %v1247 = vld [vmem:[%s1246] sm:$0xff]
          %1249 = vset.pattern.permute.xlu0 0
          %1250 = vperm.xlu0 %1249, %v1229
          %v1251 = vpop.permute.xlu0 %1250
          %v1253 = vmul.f32 %v1251, %v1247
          %v1254 = vpack.c.bf16 %v1237, %v1237
          %v1256 = vunpack.c.l.b16 %v1027
          %v1257 = vpack.c.b16 %v1256, %v1256
          %1258 = vrot.lane.b32.xlu0 %v1257, 120
          %v1259 = vpop.permute.xlu0 %1258
          %v1261 = vsel %vm1035, %v1254, 0
          %v1264 = vsel %vm1117, %v1259, 0
          %1266 = vmatprep.subr.bf16.mxu0 0
          %1267 = vmatpush1.bf16.msra.mxu0 %v1264
          %1268 = vmatprep.subr.bf16.mxu0 0
          %1269 = vmatpush1.bf16.msra.mxu0 0
          %1270 = vmatprep.subr.bf16.mxu0 0
          %1271 = vmatpush1.bf16.msra.mxu0 0
          %1272 = vmatprep.subr.bf16.mxu0 0
          %1273 = vmatpush1.bf16.msra.mxu0 0
          %1274 = vmatprep.subr.bf16.mxu0 0
          %1275 = vmatpush1.bf16.msra.mxu0 0
          %1276 = vmatprep.subr.bf16.mxu0 0
          %1277 = vmatpush1.bf16.msra.mxu0 0
          %1278 = vmatprep.subr.bf16.mxu0 0
          %1279 = vmatpush1.bf16.msra.mxu0 0
          %1280 = vmatprep.subr.bf16.mxu0 0
          %1281 = vmatpush1.bf16.msra.mxu0 0
          %1282 = vmatprep.subr.bf16.mxu0 0
          %1283 = vmatpush1.bf16.msra.mxu0 0
          %1284 = vmatprep.subr.bf16.mxu0 0
          %1285 = vmatpush1.bf16.msra.mxu0 0
          %1286 = vmatprep.subr.bf16.mxu0 0
          %1287 = vmatpush1.bf16.msra.mxu0 0
          %1288 = vmatprep.subr.bf16.mxu0 0
          %1289 = vmatpush1.bf16.msra.mxu0 0
          %1290 = vmatprep.subr.bf16.mxu0 0
          %1291 = vmatpush1.bf16.msra.mxu0 0
          %1292 = vmatprep.subr.bf16.mxu0 0
          %1293 = vmatpush1.bf16.msra.mxu0 0
          %1294 = vmatprep.subr.bf16.mxu0 0
          %1295 = vmatpush1.bf16.msra.mxu0 0
          %1296 = vmatprep.subr.bf16.mxu0 0
          %1297 = vmatpush1.bf16.msra.mxu0 0
          %1298 = vmatprep.mubr.bf16.mxu0 0
          %1299 = vmatmul.mubr.bf16.gmra.mrb[0].mxu0 %v1261
          %v1300 = vpop.f32.mrb[0].mxu0
          %v1301 = vadd.f32 0.0, %v1300
          %v1302 = vpop.f32.mrb[0].mxu0
          %v1303 = vpop.f32.mrb[0].mxu0
          %v1304 = vpop.f32.mrb[0].mxu0
          %1305 = vdwg.mxu0
          %v1306 = vadd.f32 %v1253, %v1301
          %1307 = vst.msk [vmem:[%s1246] sm:$0xff] %vm1035, %v1306
          %1308 = vst.msk [vmem:[%s1221] sm:$0xff] %vm1104, %v1226
          %v1309 = vld [vmem:[#allocation2] sm:$0xf]
          %v1311 = vunpack.c.l.b16 %v1309
          %v1312 = vpack.c.b16 %v1311, %v1311
          %1313 = vrot.lane.b32.xlu0 %v1312, 112
          %v1314 = vpop.permute.xlu0 %1313
          %1315 = vrot.lane.b32.xlu0 %v1172, 112
          %v1316 = vpop.permute.xlu0 %1315
          %v1318 = vsel %vm1035, %v1314, 0
          %v1321 = vsel %vm1035, %v1316, 0
          %1323 = vmatprep.subr.bf16.mxu0 0
          %1324 = vmatpush1.bf16.xpose.msra.mxu0 %v1321
          %1325 = vmatprep.subr.bf16.mxu0 0
          %1326 = vmatpush1.bf16.xpose.msra.mxu0 0
          %1327 = vmatprep.subr.bf16.mxu0 0
          %1328 = vmatpush1.bf16.xpose.msra.mxu0 0
          %1329 = vmatprep.subr.bf16.mxu0 0
          %1330 = vmatpush1.bf16.xpose.msra.mxu0 0
          %1331 = vmatprep.subr.bf16.mxu0 0
          %1332 = vmatpush1.bf16.xpose.msra.mxu0 0
          %1333 = vmatprep.subr.bf16.mxu0 0
          %1334 = vmatpush1.bf16.xpose.msra.mxu0 0
          %1335 = vmatprep.subr.bf16.mxu0 0
          %1336 = vmatpush1.bf16.xpose.msra.mxu0 0
          %1337 = vmatprep.subr.bf16.mxu0 0
          %1338 = vmatpush1.bf16.xpose.msra.mxu0 0
          %1339 = vmatprep.subr.bf16.mxu0 0
          %1340 = vmatpush1.bf16.xpose.msra.mxu0 0
          %1341 = vmatprep.subr.bf16.mxu0 0
          %1342 = vmatpush1.bf16.xpose.msra.mxu0 0
          %1343 = vmatprep.subr.bf16.mxu0 0
          %1344 = vmatpush1.bf16.xpose.msra.mxu0 0
          %1345 = vmatprep.subr.bf16.mxu0 0
          %1346 = vmatpush1.bf16.xpose.msra.mxu0 0
          %1347 = vmatprep.subr.bf16.mxu0 0
          %1348 = vmatpush1.bf16.xpose.msra.mxu0 0
          %1349 = vmatprep.subr.bf16.mxu0 0
          %1350 = vmatpush1.bf16.xpose.msra.mxu0 0
          %1351 = vmatprep.subr.bf16.mxu0 0
          %1352 = vmatpush1.bf16.xpose.msra.mxu0 0
          %1353 = vmatprep.subr.bf16.mxu0 0
          %1354 = vmatpush1.bf16.xpose.msra.mxu0 0
          %1355 = vmatprep.mubr.bf16.mxu0 0
          %1356 = vmatmul.mubr.bf16.gmra.mrb[0].mxu0 %v1318
          %v1357 = vpop.f32.mrb[0].mxu0
          %v1358 = vadd.f32 %v1033, %v1357
          %v1359 = vpop.f32.mrb[0].mxu0
          %v1360 = vpop.f32.mrb[0].mxu0
          %v1361 = vpop.f32.mrb[0].mxu0
          %1362 = vdwg.mxu0
          %s1363 = scalar_lea.vmem [#allocation3], 16
          %v1364 = vld [vmem:[%s1363] sm:$0xff]
          %v1365 = vsel %vm1035, %v1358, -inf
          %1366 = vmax.xlane.f32.xlu0 %v1365
          %v1367 = vpop.xlane.xlu0 %1366
          %v1368 = vmax.f32 %v1364, %v1367
          %v1369 = vsub.f32 %v1364, %v1368
          %v1370 = vmul.f32 %v1369, 1.442695
          %v1371 = vpow.pop %v1370
          %1373 = vset.pattern.permute.xlu0 0
          %1374 = vperm.xlu0 %1373, %v1368
          %v1375 = vpop.permute.xlu0 %1374
          %v1377 = vsub.f32 %v1358, %v1375
          %v1378 = vmul.f32 %v1377, 1.442695
          %v1379 = vpow.pop %v1378
          %s1380 = scalar_lea.vmem [#allocation4], 16
          %v1381 = vld [vmem:[%s1380] sm:$0xff]
          %v1382 = vmul.f32 %v1371, %v1381
          %v1383 = vsel %vm1035, %v1379, 0.0
          %1384 = vadd.xlane.f32.xlu0 %v1383
          %v1385 = vpop.xlane.xlu0 %1384
          %v1386 = vadd.f32 %v1382, %v1385
          %1387 = vst.msk [vmem:[%s1380] sm:$0xff] %vm1104, %v1386
          %s1388 = scalar_lea.vmem [#allocation5], 16
          %v1389 = vld [vmem:[%s1388] sm:$0xff]
          %1391 = vset.pattern.permute.xlu0 0
          %1392 = vperm.xlu0 %1391, %v1371
          %v1393 = vpop.permute.xlu0 %1392
          %v1395 = vmul.f32 %v1393, %v1389
          %v1396 = vpack.c.bf16 %v1379, %v1379
          %1397 = vrot.lane.b32.xlu0 %v1257, 112
          %v1398 = vpop.permute.xlu0 %1397
          %v1400 = vsel %vm1035, %v1396, 0
          %v1403 = vsel %vm1117, %v1398, 0
          %1405 = vmatprep.subr.bf16.mxu0 0
          %1406 = vmatpush1.bf16.msra.mxu0 %v1403
          %1407 = vmatprep.subr.bf16.mxu0 0
          %1408 = vmatpush1.bf16.msra.mxu0 0
          %1409 = vmatprep.subr.bf16.mxu0 0
          %1410 = vmatpush1.bf16.msra.mxu0 0
          %1411 = vmatprep.subr.bf16.mxu0 0
          %1412 = vmatpush1.bf16.msra.mxu0 0
          %1413 = vmatprep.subr.bf16.mxu0 0
          %1414 = vmatpush1.bf16.msra.mxu0 0
          %1415 = vmatprep.subr.bf16.mxu0 0
          %1416 = vmatpush1.bf16.msra.mxu0 0
          %1417 = vmatprep.subr.bf16.mxu0 0
          %1418 = vmatpush1.bf16.msra.mxu0 0
          %1419 = vmatprep.subr.bf16.mxu0 0
          %1420 = vmatpush1.bf16.msra.mxu0 0
          %1421 = vmatprep.subr.bf16.mxu0 0
          %1422 = vmatpush1.bf16.msra.mxu0 0
          %1423 = vmatprep.subr.bf16.mxu0 0
          %1424 = vmatpush1.bf16.msra.mxu0 0
          %1425 = vmatprep.subr.bf16.mxu0 0
          %1426 = vmatpush1.bf16.msra.mxu0 0
          %1427 = vmatprep.subr.bf16.mxu0 0
          %1428 = vmatpush1.bf16.msra.mxu0 0
          %1429 = vmatprep.subr.bf16.mxu0 0
          %1430 = vmatpush1.bf16.msra.mxu0 0
          %1431 = vmatprep.subr.bf16.mxu0 0
          %1432 = vmatpush1.bf16.msra.mxu0 0
          %1433 = vmatprep.subr.bf16.mxu0 0
          %1434 = vmatpush1.bf16.msra.mxu0 0
          %1435 = vmatprep.subr.bf16.mxu0 0
          %1436 = vmatpush1.bf16.msra.mxu0 0
          %1437 = vmatprep.mubr.bf16.mxu0 0
          %1438 = vmatmul.mubr.bf16.gmra.mrb[0].mxu0 %v1400
          %v1439 = vpop.f32.mrb[0].mxu0
          %v1440 = vadd.f32 0.0, %v1439
          %v1441 = vpop.f32.mrb[0].mxu0
          %v1442 = vpop.f32.mrb[0].mxu0
          %v1443 = vpop.f32.mrb[0].mxu0
          %1444 = vdwg.mxu0
          %v1445 = vadd.f32 %v1395, %v1440
          %1446 = vst.msk [vmem:[%s1388] sm:$0xff] %vm1035, %v1445
          %1447 = vst.msk [vmem:[%s1363] sm:$0xff] %vm1104, %v1368
          %v1448 = vld [vmem:[#allocation2] sm:$0xf]
          %v1450 = vunpack.c.l.b16 %v1448
          %v1451 = vpack.c.b16 %v1450, %v1450
          %1452 = vrot.lane.b32.xlu0 %v1451, 104
          %v1453 = vpop.permute.xlu0 %1452
          %1454 = vrot.lane.b32.xlu0 %v1172, 104
          %v1455 = vpop.permute.xlu0 %1454
          %v1457 = vsel %vm1035, %v1453, 0
          %v1460 = vsel %vm1035, %v1455, 0
          %1462 = vmatprep.subr.bf16.mxu0 0
          %1463 = vmatpush1.bf16.xpose.msra.mxu0 %v1460
          %1464 = vmatprep.subr.bf16.mxu0 0
          %1465 = vmatpush1.bf16.xpose.msra.mxu0 0
          %1466 = vmatprep.subr.bf16.mxu0 0
          %1467 = vmatpush1.bf16.xpose.msra.mxu0 0
          %1468 = vmatprep.subr.bf16.mxu0 0
          %1469 = vmatpush1.bf16.xpose.msra.mxu0 0
          %1470 = vmatprep.subr.bf16.mxu0 0
          %1471 = vmatpush1.bf16.xpose.msra.mxu0 0
          %1472 = vmatprep.subr.bf16.mxu0 0
          %1473 = vmatpush1.bf16.xpose.msra.mxu0 0
          %1474 = vmatprep.subr.bf16.mxu0 0
          %1475 = vmatpush1.bf16.xpose.msra.mxu0 0
          %1476 = vmatprep.subr.bf16.mxu0 0
          %1477 = vmatpush1.bf16.xpose.msra.mxu0 0
          %1478 = vmatprep.subr.bf16.mxu0 0
          %1479 = vmatpush1.bf16.xpose.msra.mxu0 0
          %1480 = vmatprep.subr.bf16.mxu0 0
          %1481 = vmatpush1.bf16.xpose.msra.mxu0 0
          %1482 = vmatprep.subr.bf16.mxu0 0
          %1483 = vmatpush1.bf16.xpose.msra.mxu0 0
          %1484 = vmatprep.subr.bf16.mxu0 0
          %1485 = vmatpush1.bf16.xpose.msra.mxu0 0
          %1486 = vmatprep.subr.bf16.mxu0 0
          %1487 = vmatpush1.bf16.xpose.msra.mxu0 0
          %1488 = vmatprep.subr.bf16.mxu0 0
          %1489 = vmatpush1.bf16.xpose.msra.mxu0 0
          %1490 = vmatprep.subr.bf16.mxu0 0
          %1491 = vmatpush1.bf16.xpose.msra.mxu0 0
          %1492 = vmatprep.subr.bf16.mxu0 0
          %1493 = vmatpush1.bf16.xpose.msra.mxu0 0
          %1494 = vmatprep.mubr.bf16.mxu0 0
          %1495 = vmatmul.mubr.bf16.gmra.mrb[0].mxu0 %v1457
          %v1496 = vpop.f32.mrb[0].mxu0
          %v1497 = vadd.f32 %v1033, %v1496
          %v1498 = vpop.f32.mrb[0].mxu0
          %v1499 = vpop.f32.mrb[0].mxu0
          %v1500 = vpop.f32.mrb[0].mxu0
          %1501 = vdwg.mxu0
          %s1502 = scalar_lea.vmem [#allocation3], 24
          %v1503 = vld [vmem:[%s1502] sm:$0xff]
          %v1504 = vsel %vm1035, %v1497, -inf
          %1505 = vmax.xlane.f32.xlu0 %v1504
          %v1506 = vpop.xlane.xlu0 %1505
          %v1507 = vmax.f32 %v1503, %v1506
          %v1508 = vsub.f32 %v1503, %v1507
          %v1509 = vmul.f32 %v1508, 1.442695
          %v1510 = vpow.pop %v1509
          %1512 = vset.pattern.permute.xlu0 0
          %1513 = vperm.xlu0 %1512, %v1507
          %v1514 = vpop.permute.xlu0 %1513
          %v1516 = vsub.f32 %v1497, %v1514
          %v1517 = vmul.f32 %v1516, 1.442695
          %v1518 = vpow.pop %v1517
          %s1519 = scalar_lea.vmem [#allocation4], 24
          %v1520 = vld [vmem:[%s1519] sm:$0xff]
          %v1521 = vmul.f32 %v1510, %v1520
          %v1522 = vsel %vm1035, %v1518, 0.0
          %1523 = vadd.xlane.f32.xlu0 %v1522
          %v1524 = vpop.xlane.xlu0 %1523
          %v1525 = vadd.f32 %v1521, %v1524
          %1526 = vst.msk [vmem:[%s1519] sm:$0xff] %vm1104, %v1525
          %s1527 = scalar_lea.vmem [#allocation5], 24
          %v1528 = vld [vmem:[%s1527] sm:$0xff]
          %1530 = vset.pattern.permute.xlu0 0
          %1531 = vperm.xlu0 %1530, %v1510
          %v1532 = vpop.permute.xlu0 %1531
          %v1534 = vmul.f32 %v1532, %v1528
          %v1535 = vpack.c.bf16 %v1518, %v1518
          %1536 = vrot.lane.b32.xlu0 %v1257, 104
          %v1537 = vpop.permute.xlu0 %1536
          %v1539 = vsel %vm1035, %v1535, 0
          %v1542 = vsel %vm1117, %v1537, 0
          %1544 = vmatprep.subr.bf16.mxu0 0
          %1545 = vmatpush1.bf16.msra.mxu0 %v1542
          %1546 = vmatprep.subr.bf16.mxu0 0
          %1547 = vmatpush1.bf16.msra.mxu0 0
          %1548 = vmatprep.subr.bf16.mxu0 0
          %1549 = vmatpush1.bf16.msra.mxu0 0
          %1550 = vmatprep.subr.bf16.mxu0 0
          %1551 = vmatpush1.bf16.msra.mxu0 0
          %1552 = vmatprep.subr.bf16.mxu0 0
          %1553 = vmatpush1.bf16.msra.mxu0 0
          %1554 = vmatprep.subr.bf16.mxu0 0
          %1555 = vmatpush1.bf16.msra.mxu0 0
          %1556 = vmatprep.subr.bf16.mxu0 0
          %1557 = vmatpush1.bf16.msra.mxu0 0
          %1558 = vmatprep.subr.bf16.mxu0 0
          %1559 = vmatpush1.bf16.msra.mxu0 0
          %1560 = vmatprep.subr.bf16.mxu0 0
          %1561 = vmatpush1.bf16.msra.mxu0 0
          %1562 = vmatprep.subr.bf16.mxu0 0
          %1563 = vmatpush1.bf16.msra.mxu0 0
          %1564 = vmatprep.subr.bf16.mxu0 0
          %1565 = vmatpush1.bf16.msra.mxu0 0
          %1566 = vmatprep.subr.bf16.mxu0 0
          %1567 = vmatpush1.bf16.msra.mxu0 0
          %1568 = vmatprep.subr.bf16.mxu0 0
          %1569 = vmatpush1.bf16.msra.mxu0 0
          %1570 = vmatprep.subr.bf16.mxu0 0
          %1571 = vmatpush1.bf16.msra.mxu0 0
          %1572 = vmatprep.subr.bf16.mxu0 0
          %1573 = vmatpush1.bf16.msra.mxu0 0
          %1574 = vmatprep.subr.bf16.mxu0 0
          %1575 = vmatpush1.bf16.msra.mxu0 0
          %1576 = vmatprep.mubr.bf16.mxu0 0
          %1577 = vmatmul.mubr.bf16.gmra.mrb[0].mxu0 %v1539
          %v1578 = vpop.f32.mrb[0].mxu0
          %v1579 = vadd.f32 0.0, %v1578
          %v1580 = vpop.f32.mrb[0].mxu0
          %v1581 = vpop.f32.mrb[0].mxu0
          %v1582 = vpop.f32.mrb[0].mxu0
          %1583 = vdwg.mxu0
          %v1584 = vadd.f32 %v1534, %v1579
          %1585 = vst.msk [vmem:[%s1527] sm:$0xff] %vm1035, %v1584
          %1586 = vst.msk [vmem:[%s1502] sm:$0xff] %vm1104, %v1507
        $region68: #{tpu_custom_call.1} parent=39 // pred_fallthru
          _
        // Predicated region
        $region69: #{tpu_custom_call.1} parent=39 // pred_check
          %p1587 = pneg %p381
        $region70: #{tpu_custom_call.1} parent=39 // pred_check_branch
          %1589 = sbr.rel (%p1587) target = $region72
        $region71: #{tpu_custom_call.1} parent=39 // pred_region
          %v1590 = vld [vmem:[#allocation4] sm:$0xff]
          %v1591 = vrcp.pop %v1590
          %v1592 = vld [vmem:[#allocation5] sm:$0xff]
          %1594 = vset.pattern.permute.xlu0 0
          %1595 = vperm.xlu0 %1594, %v1591
          %v1596 = vpop.permute.xlu0 %1595
          %v1598 = vmul.f32 %v1592, %v1596
          %v1599 = vpack.c.bf16 %v1598, %v1598
          %vm1600 = vcmask 60416
          %1601 = vst.msk [vmem:[#allocation6] sm:$0xf] %vm1600, %v1599
          %s1602 = scalar_lea.vmem [#allocation4], 8
          %v1603 = vld [vmem:[%s1602] sm:$0xff]
          %v1604 = vrcp.pop %v1603
          %s1605 = scalar_lea.vmem [#allocation5], 8
          %v1606 = vld [vmem:[%s1605] sm:$0xff]
          %1608 = vset.pattern.permute.xlu0 0
          %1609 = vperm.xlu0 %1608, %v1604
          %v1610 = vpop.permute.xlu0 %1609
          %v1612 = vmul.f32 %v1606, %v1610
          %v1613 = vpack.c.bf16 %v1612, %v1612
          %v1615 = vunpack.c.l.b16 %v1613
          %v1616 = vpack.c.b16 %v1615, %v1615
          %1617 = vrot.lane.b32.xlu0 %v1616, 8
          %v1618 = vpop.permute.xlu0 %1617
          %vm1620 = vcmask 126016
          %1621 = vst.msk [vmem:[#allocation6] sm:$0xf] %vm1620, %v1618
          %s1622 = scalar_lea.vmem [#allocation4], 16
          %v1623 = vld [vmem:[%s1622] sm:$0xff]
          %v1624 = vrcp.pop %v1623
          %s1625 = scalar_lea.vmem [#allocation5], 16
          %v1626 = vld [vmem:[%s1625] sm:$0xff]
          %1628 = vset.pattern.permute.xlu0 0
          %1629 = vperm.xlu0 %1628, %v1624
          %v1630 = vpop.permute.xlu0 %1629
          %v1632 = vmul.f32 %v1626, %v1630
          %v1633 = vpack.c.bf16 %v1632, %v1632
          %v1635 = vunpack.c.l.b16 %v1633
          %v1636 = vpack.c.b16 %v1635, %v1635
          %1637 = vrot.lane.b32.xlu0 %v1636, 16
          %v1638 = vpop.permute.xlu0 %1637
          %vm1640 = vcmask 191616
          %1641 = vst.msk [vmem:[#allocation6] sm:$0xf] %vm1640, %v1638
          %s1642 = scalar_lea.vmem [#allocation4], 24
          %v1643 = vld [vmem:[%s1642] sm:$0xff]
          %v1644 = vrcp.pop %v1643
          %s1645 = scalar_lea.vmem [#allocation5], 24
          %v1646 = vld [vmem:[%s1645] sm:$0xff]
          %1648 = vset.pattern.permute.xlu0 0
          %1649 = vperm.xlu0 %1648, %v1644
          %v1650 = vpop.permute.xlu0 %1649
          %v1652 = vmul.f32 %v1646, %v1650
          %v1653 = vpack.c.bf16 %v1652, %v1652
          %v1655 = vunpack.c.l.b16 %v1653
          %v1656 = vpack.c.b16 %v1655, %v1655
          %1657 = vrot.lane.b32.xlu0 %v1656, 24
          %v1658 = vpop.permute.xlu0 %1657
          %vm1660 = vcmask 257216
          %1661 = vst.msk [vmem:[#allocation6] sm:$0xf] %vm1660, %v1658
          %v1662 = vld [vmem:[#allocation6] sm:$0xf]
          %v1663 = vld [vmem:[#allocation13] sm:$0xf]
          %v1664 = vld [vmem:[#allocation13 + $0x4] sm:$0xf]
          %v1665 = vld [vmem:[#allocation13 + $0x8] sm:$0xf]
          %v1666 = vld [vmem:[#allocation13 + $0xc] sm:$0xf]
          %v1671 = vunpack.c.l.b16 %v1663
          %v1672 = vunpack.c.l.b16 %v1664
          %v1673 = vunpack.c.l.b16 %v1665
          %v1674 = vunpack.c.l.b16 %v1666
          %v1675 = vpack.c.b16 %v1672, %v1671
          %v1676 = vpack.c.b16 %v1674, %v1673
          %vm1679 = vcmask 261120
          %v1681 = vsel %vm1679, %v1662, 0
          %1683 = vmatprep.subr.bf16.mxu0 0
          %1684 = vmatpush1.bf16.msra.mxu0 %v1675
          %1685 = vmatprep.subr.bf16.mxu0 0
          %1686 = vmatpush1.bf16.msra.mxu0 %v1676
          %1687 = vmatprep.subr.bf16.mxu0 0
          %1688 = vmatpush1.bf16.msra.mxu0 0
          %1689 = vmatprep.subr.bf16.mxu0 0
          %1690 = vmatpush1.bf16.msra.mxu0 0
          %1691 = vmatprep.subr.bf16.mxu0 0
          %1692 = vmatpush1.bf16.msra.mxu0 0
          %1693 = vmatprep.subr.bf16.mxu0 0
          %1694 = vmatpush1.bf16.msra.mxu0 0
          %1695 = vmatprep.subr.bf16.mxu0 0
          %1696 = vmatpush1.bf16.msra.mxu0 0
          %1697 = vmatprep.subr.bf16.mxu0 0
          %1698 = vmatpush1.bf16.msra.mxu0 0
          %1699 = vmatprep.subr.bf16.mxu0 0
          %1700 = vmatpush1.bf16.msra.mxu0 0
          %1701 = vmatprep.subr.bf16.mxu0 0
          %1702 = vmatpush1.bf16.msra.mxu0 0
          %1703 = vmatprep.subr.bf16.mxu0 0
          %1704 = vmatpush1.bf16.msra.mxu0 0
          %1705 = vmatprep.subr.bf16.mxu0 0
          %1706 = vmatpush1.bf16.msra.mxu0 0
          %1707 = vmatprep.subr.bf16.mxu0 0
          %1708 = vmatpush1.bf16.msra.mxu0 0
          %1709 = vmatprep.subr.bf16.mxu0 0
          %1710 = vmatpush1.bf16.msra.mxu0 0
          %1711 = vmatprep.subr.bf16.mxu0 0
          %1712 = vmatpush1.bf16.msra.mxu0 0
          %1713 = vmatprep.subr.bf16.mxu0 0
          %1714 = vmatpush1.bf16.msra.mxu0 0
          %1715 = vmatprep.mubr.bf16.mxu0 0
          %1716 = vmatmul.mubr.bf16.gmra.mrb[0].mxu0 %v1681
          %v1717 = vpop.f32.mrb[0].mxu0
          %v1718 = vadd.f32 0.0, %v1717
          %v1719 = vpop.f32.mrb[0].mxu0
          %v1720 = vpop.f32.mrb[0].mxu0
          %v1721 = vpop.f32.mrb[0].mxu0
          %1722 = vdwg.mxu0
          %1723 = vst.msk [vmem:[%s366] sm:$0xff] %vm1679, %v1718
        $region72: #{tpu_custom_call.1} parent=39 // pred_fallthru
          _
        %s1724 = sand.u32 %s186, 1
        %s1725 = scalar_lea.sflag [#allocation9], %s1724
        %s1726 = sand.u32 %s186, 1
        %s1727 = smul.addr %s1726, 8
        %s1728 = scalar_lea.vmem [#allocation14], %s1727
        // Predicated region
        $region73: #{tpu_custom_call.1} parent=39 // pred_check
          %p1729 = pneg %p196
        $region74: #{tpu_custom_call.1} parent=39 // pred_check_branch
          %1731 = sbr.rel (%p1729) target = $region76
        $region75: #{tpu_custom_call.1} parent=39 // pred_region
          %s1733 = ssub.s32 128, 128
          %1734 = vsyncadd %s1725, %s1733
          %s1735 = sadd.s32 %s29, %s28
          %s1736 = smul.addr %s1735, 128
          %s1737 = scalar_lea.hbm %s5, %s1736
          %s1739 = sshll.u32 %s1728, 4
          %s1740 = int_to_ptr.vmem [resolvable:$true] %s1739
          %1742 = dma.vmem_to_hbm [thread:$0]  %s1740, 128, %s1737, %s1725
        $region76: #{tpu_custom_call.1} parent=39 // pred_fallthru
          _
      $region40: #{tpu_custom_call.1} parent=5 // pred_fallthru
        _
      %p1743 = scmp.le.s32.totalorder 2, %s18
      // Predicated region
      $region77: #{tpu_custom_call.1} parent=5 // pred_check
        %p1744 = pneg %p1743
      $region78: #{tpu_custom_call.1} parent=5 // pred_check_branch
        %1746 = sbr.rel (%p1744) target = $region80
      $region79: #{tpu_custom_call.1} parent=5 // pred_region
        %s1747 = ssub.s32 %s18, 2
        // Predicated region
        $region81: #{tpu_custom_call.1} parent=79 // pred_check
          %p1748 = pneg %p202
        $region82: #{tpu_custom_call.1} parent=79 // pred_check_branch
          %1750 = sbr.rel (%p1748) target = $region84
        $region83: #{tpu_custom_call.1} parent=79 // pred_region
          %s1751 = sand.u32 %s187, 1
          %s1752 = scalar_lea.sflag [#allocation9], %s1751
          %s1753 = sand.u32 %s187, 1
          %s1754 = smul.addr %s1753, 8
          %s1755 = scalar_lea.vmem [#allocation14], %s1754
          %1756 = dma.done %s1752, 128
        $region84: #{tpu_custom_call.1} parent=79 // pred_fallthru
          _
      $region80: #{tpu_custom_call.1} parent=5 // pred_fallthru
        _
    $region6: #{tpu_custom_call.1} parent=1 // loop_footer
      %s22 = sadd.s32 1, %s18
    $region7: #{tpu_custom_call.1} parent=1 // loop_footer_branch
      %17 = sbr.rel target = $region3
    $region8: #{tpu_custom_call.1} parent=1 // loop_exit
      _
    %1757 = vsyncpa [#allocation8], 1
    %s1758 = scalar_lea.sflag [#allocation8], 1
    %1759 = vsyncpa %s1758, 1
    %1760 = vsyncpa [#allocation11], 1
    %1761 = vsyncpa [#allocation9], 1
    %s1762 = scalar_lea.sflag [#allocation9], 1
    %1763 = vsyncpa %s1762, 1

</llo_original>
